<compile_context>
chip_gen: v5e
topology: v5e:2x2
jax: 0.10.0
libtpu: 0.0.40
codegen_flags: <defaults>
</compile_context>

<pallas_src>
import jax
import jax.numpy as jnp
from jax.experimental import pallas as pl
from jax.experimental.pallas import tpu as pltpu

IN_DIM = 28 * 28          # 784
ENCODING_DIM = 32


def _round_up(x, m):
    return (x + m - 1) // m * m


def autoencoder_kernel(x_ref, w1_ref, b1_ref, w2_ref, b2_ref, o_ref):
    # Encoder: Linear(784 -> 32) + ReLU. bf16 operands, f32 MXU accumulation.
    h = jnp.dot(x_ref[...], w1_ref[...], preferred_element_type=jnp.float32)
    h = jnp.maximum(h + b1_ref[...], 0.0)          # f32 bias add + ReLU (VPU)

    # Decoder: Linear(32 -> 784) + Sigmoid. Feed MXU in bf16, accumulate f32.
    y = jnp.dot(h.astype(jnp.bfloat16), w2_ref[...],
                preferred_element_type=jnp.float32)
    y = y + b2_ref[...]                            # f32 bias add
    # f32 sigmoid (EUP), cast to storage dtype on store.
    o_ref[...] = jax.nn.sigmoid(y).astype(o_ref.dtype)


def autoencoder_forward(x, w1, b1, w2, b2, *, bm=512):
    """x: [B, 784]. Weights stored [in, out] (transposed vs PyTorch).

    Returns [B, 784] bfloat16 (sigmoid outputs in (0, 1)).
    """
    B, D = x.shape
    assert D == IN_DIM

    # Effective batch tile: large enough to amortize per-step overhead, but
    # never larger than the (16-rounded, bf16-sublane-friendly) batch itself.
    bm_eff = min(bm, _round_up(B, 16))
    B_pad = _round_up(B, bm_eff)

    xf = x.astype(jnp.float32)
    if B_pad != B:
        xf = jnp.pad(xf, ((0, B_pad - B), (0, 0)))

    # bf16 streaming for the bandwidth-dominant tensors; biases stay f32.
    x16 = xf.astype(jnp.bfloat16)
    w1_16 = w1.astype(jnp.bfloat16)
    w2_16 = w2.astype(jnp.bfloat16)
    b1_f = b1.astype(jnp.float32).reshape(1, ENCODING_DIM)
    b2_f = b2.astype(jnp.float32).reshape(1, IN_DIM)

    grid = (B_pad // bm_eff,)

    # VMEM budget: double-buffered x/out tiles (bf16) + f32 intermediates +
    # resident weights, with 2x headroom; clamp to [32 MiB, 64 MiB] so it is
    # valid on every generation (v7x physical VMEM is 64 MiB/TC).
    per_step_bytes = (
        4 * bm_eff * IN_DIM * 2                       # x + out tiles, 2-buffered, bf16
        + bm_eff * IN_DIM * 4                         # y intermediate, f32
        + 2 * bm_eff * ENCODING_DIM * 4               # h (+ bf16 copy)
        + 2 * (2 * IN_DIM * ENCODING_DIM * 2          # W1 + W2, bf16
               + (IN_DIM + ENCODING_DIM) * 4)         # biases, f32
    )
    vmem_limit = min(64 * 1024 * 1024,
                     max(32 * 1024 * 1024, 2 * per_step_bytes))

    cost = pl.CostEstimate(
        flops=4 * B_pad * IN_DIM * ENCODING_DIM,          # two GEMMs
        transcendentals=B_pad * IN_DIM,                   # sigmoid
        bytes_accessed=(2 * B_pad * IN_DIM * 2            # x + out, bf16
                        + 2 * IN_DIM * ENCODING_DIM * 2   # W1 + W2, bf16
                        + (IN_DIM + ENCODING_DIM) * 4),   # biases, f32
    )

    out = pl.pallas_call(
        autoencoder_kernel,
        out_shape=jax.ShapeDtypeStruct((B_pad, IN_DIM), jnp.bfloat16),
        grid_spec=pltpu.PrefetchScalarGridSpec(
            num_scalar_prefetch=0,
            grid=grid,
            in_specs=[
                # x tiled over batch; full feature width per tile.
                pl.BlockSpec((bm_eff, IN_DIM), lambda i: (i, 0)),
                # Weights / biases: whole arrays, resident across grid steps.
                pl.BlockSpec((IN_DIM, ENCODING_DIM), lambda i: (0, 0)),
                pl.BlockSpec((1, ENCODING_DIM), lambda i: (0, 0)),
                pl.BlockSpec((ENCODING_DIM, IN_DIM), lambda i: (0, 0)),
                pl.BlockSpec((1, IN_DIM), lambda i: (0, 0)),
            ],
            out_specs=pl.BlockSpec((bm_eff, IN_DIM), lambda i: (i, 0)),
        ),
        compiler_params=pltpu.CompilerParams(
            dimension_semantics=("parallel",),
            vmem_limit_bytes=vmem_limit,
        ),
        cost_estimate=cost,
    )(x16, w1_16, b1_f, w2_16, b2_f)

    return out[:B] if B_pad != B else out


def init_params(key):
    """Deterministic init mimicking nn.Linear's default U(-1/sqrt(fan_in), +)."""
    k1, k2, k3, k4 = jax.random.split(key, 4)
    bound1 = 1.0 / jnp.sqrt(jnp.float32(IN_DIM))
    bound2 = 1.0 / jnp.sqrt(jnp.float32(ENCODING_DIM))
    # Stored as [in, out] (transposed PyTorch layout) for direct x @ W.
    w1 = jax.random.uniform(k1, (IN_DIM, ENCODING_DIM), jnp.float32,
                            -bound1, bound1)
    b1 = jax.random.uniform(k2, (1, ENCODING_DIM), jnp.float32,
                            -bound1, bound1)
    w2 = jax.random.uniform(k3, (ENCODING_DIM, IN_DIM), jnp.float32,
                            -bound2, bound2)
    b2 = jax.random.uniform(k4, (1, IN_DIM), jnp.float32,
                            -bound2, bound2)
    return w1, b1, w2, b2


def reference_forward(x, w1, b1, w2, b2):
    h = jnp.maximum(x @ w1 + b1, 0.0)
    return jax.nn.sigmoid(h @ w2 + b2)


if __name__ == "__main__":
    key = jax.random.PRNGKey(0)
    k_x, k_p = jax.random.split(key)

    # Small test batch, deliberately NOT a multiple of the tile to exercise
    # the pad-and-slice path in the wrapper.
    B = 50
    x = jax.random.uniform(k_x, (B, IN_DIM), jnp.float32)  # "pixel" inputs in [0,1)

    w1, b1, w2, b2 = init_params(k_p)

    out = autoencoder_forward(x, w1, b1, w2, b2)
    out = jax.block_until_ready(out)

    # correctness check against pure-JAX f32 reference (bf16 streaming tolerance)
    ref = reference_forward(x, w1, b1, w2, b2)
    assert out.shape == (B, IN_DIM)
    assert out.dtype == jnp.bfloat16
    max_err = jnp.max(jnp.abs(out.astype(jnp.float32) - ref))
    assert max_err < 2e-2, f"mismatch vs reference: max abs err {max_err}"

    print("KERNEL_OK")
</pallas_src>

<mosaic_0001>
module attributes {stable_mosaic.version = 11 : i64} {
  func.func @autoencoder_kernel(%arg0: i32, %arg1: memref<64x784xbf16, #tpu.memory_space<vmem>>, %arg2: memref<784x32xbf16, #tpu.memory_space<vmem>>, %arg3: memref<1x32xf32, #tpu.memory_space<vmem>>, %arg4: memref<32x784xbf16, #tpu.memory_space<vmem>>, %arg5: memref<1x784xf32, #tpu.memory_space<vmem>>, %arg6: memref<64x784xbf16, #tpu.memory_space<vmem>>) attributes {dimension_semantics = [#tpu.dimension_semantics<parallel>], iteration_bounds = array<i64: 1>, scalar_prefetch = 0 : i64, scratch_operands = 0 : i64, tpu.core_type = #tpu.core_type<tc>, window_params = [{transform_indices = @transform_0, window_bounds = array<i64: 64, 784>}, {pipeline_mode = #tpu.pipeline_mode<synchronous>, transform_indices = @transform_1, window_bounds = array<i64: 784, 32>}, {pipeline_mode = #tpu.pipeline_mode<synchronous>, transform_indices = @transform_2, window_bounds = array<i64: 1, 32>}, {pipeline_mode = #tpu.pipeline_mode<synchronous>, transform_indices = @transform_3, window_bounds = array<i64: 32, 784>}, {pipeline_mode = #tpu.pipeline_mode<synchronous>, transform_indices = @transform_4, window_bounds = array<i64: 1, 784>}, {transform_indices = @transform_5, window_bounds = array<i64: 64, 784>}]} {
    %c0 = arith.constant 0 : index
    %c0_0 = arith.constant 0 : index
    %0 = vector.load %arg1[%c0, %c0_0] : memref<64x784xbf16, #tpu.memory_space<vmem>>, vector<64x784xbf16>
    %c0_1 = arith.constant 0 : index
    %c0_2 = arith.constant 0 : index
    %1 = vector.load %arg2[%c0_1, %c0_2] : memref<784x32xbf16, #tpu.memory_space<vmem>>, vector<784x32xbf16>
    %cst = arith.constant dense<0.000000e+00> : vector<64x32xf32>
    %2 = tpu.matmul %0, %1, %cst {dimension_numbers = #tpu.dot_dimension_numbers<[1], [0], [0], [1], [0, 0, 1, 1], [], []>} : vector<64x784xbf16>, vector<784x32xbf16>, vector<64x32xf32> -> vector<64x32xf32>
    %c0_3 = arith.constant 0 : index
    %c0_4 = arith.constant 0 : index
    %3 = vector.load %arg3[%c0_3, %c0_4] : memref<1x32xf32, #tpu.memory_space<vmem>>, vector<1x32xf32>
    %4 = vector.broadcast %3 : vector<1x32xf32> to vector<64x32xf32>
    %5 = arith.addf %2, %4 : vector<64x32xf32>
    %cst_5 = arith.constant 0.000000e+00 : f32
    %6 = vector.broadcast %cst_5 : f32 to vector<64x32xf32>
    %7 = arith.maximumf %5, %6 : vector<64x32xf32>
    %8 = arith.truncf %7 : vector<64x32xf32> to vector<64x32xbf16>
    %c0_6 = arith.constant 0 : index
    %c0_7 = arith.constant 0 : index
    %9 = vector.load %arg4[%c0_6, %c0_7] : memref<32x784xbf16, #tpu.memory_space<vmem>>, vector<32x784xbf16>
    %cst_8 = arith.constant dense<0.000000e+00> : vector<64x784xf32>
    %10 = tpu.matmul %8, %9, %cst_8 {dimension_numbers = #tpu.dot_dimension_numbers<[1], [0], [0], [1], [0, 0, 1, 1], [], []>} : vector<64x32xbf16>, vector<32x784xbf16>, vector<64x784xf32> -> vector<64x784xf32>
    %c0_9 = arith.constant 0 : index
    %c0_10 = arith.constant 0 : index
    %11 = vector.load %arg5[%c0_9, %c0_10] : memref<1x784xf32, #tpu.memory_space<vmem>>, vector<1x784xf32>
    %12 = vector.broadcast %11 : vector<1x784xf32> to vector<64x784xf32>
    %13 = arith.addf %10, %12 : vector<64x784xf32>
    %14 = arith.negf %13 : vector<64x784xf32>
    %15 = math.exp %14 : vector<64x784xf32>
    %cst_11 = arith.constant 1.000000e+00 : f32
    %16 = vector.broadcast %cst_11 : f32 to vector<64x784xf32>
    %17 = arith.addf %16, %15 : vector<64x784xf32>
    %18 = arith.divf %16, %17 : vector<64x784xf32>
    %19 = arith.truncf %18 : vector<64x784xf32> to vector<64x784xbf16>
    %c0_12 = arith.constant 0 : index
    %c0_13 = arith.constant 0 : index
    %20 = vector.load %arg6[%c0_12, %c0_13] : memref<64x784xbf16, #tpu.memory_space<vmem>>, vector<64x784xbf16>
    tpu.vector_store %arg6[%c0_12, %c0_13], %19 {strides = array<i32>} : memref<64x784xbf16, #tpu.memory_space<vmem>>, vector<64x784xbf16>,
    return
  }
  func.func @transform_0(%arg0: i32) -> (i32, i32) {
    %c0_i32 = arith.constant 0 : i32
    %c0_i32_0 = arith.constant 0 : i32
    return %arg0, %c0_i32 : i32, i32
  }
  func.func @transform_1(%arg0: i32) -> (i32, i32) {
    %c0_i32 = arith.constant 0 : i32
    %c0_i32_0 = arith.constant 0 : i32
    %c0_i32_1 = arith.constant 0 : i32
    return %c0_i32, %c0_i32_0 : i32, i32
  }
  func.func @transform_2(%arg0: i32) -> (i32, i32) {
    %c0_i32 = arith.constant 0 : i32
    %c0_i32_0 = arith.constant 0 : i32
    %c0_i32_1 = arith.constant 0 : i32
    return %c0_i32, %c0_i32_0 : i32, i32
  }
  func.func @transform_3(%arg0: i32) -> (i32, i32) {
    %c0_i32 = arith.constant 0 : i32
    %c0_i32_0 = arith.constant 0 : i32
    %c0_i32_1 = arith.constant 0 : i32
    return %c0_i32, %c0_i32_0 : i32, i32
  }
  func.func @transform_4(%arg0: i32) -> (i32, i32) {
    %c0_i32 = arith.constant 0 : i32
    %c0_i32_0 = arith.constant 0 : i32
    %c0_i32_1 = arith.constant 0 : i32
    return %c0_i32, %c0_i32_0 : i32, i32
  }
  func.func @transform_5(%arg0: i32) -> (i32, i32) {
    %c0_i32 = arith.constant 0 : i32
    %c0_i32_0 = arith.constant 0 : i32
    return %arg0, %c0_i32 : i32, i32
  }
}

</mosaic_0001>

<llo_original>
// kernel: tpu_custom_call.1
$region0: #{tpu_custom_call.1}
  #allocation0 [shape = 'u32[]', space=smem, size = 0x4, offset = 0x4, fixed_abs, tag = 'smem constant byte address 0x4 - core index']
  #allocation1 [shape = 'u32[72,128]{1,0:T(1,128)}', space=vmem, size = 0x9000, scoped, tag = 'internal scratch']
  %s0 = inlined_call_operand.vmem [shape: bf16[64,784], index: 0, kind: input, shape index: {}]
  %s1 = inlined_call_operand.vmem [shape: bf16[784,32], index: 1, kind: input, shape index: {}]
  %s2 = inlined_call_operand.vmem [shape: f32[1,32], index: 2, kind: input, shape index: {}]
  %s3 = inlined_call_operand.vmem [shape: bf16[32,784], index: 3, kind: input, shape index: {}]
  %s4 = inlined_call_operand.vmem [shape: f32[1,784], index: 4, kind: input, shape index: {}]
  %s5 = inlined_call_operand.hbm [shape: bf16[64,784], index: 5, kind: output, shape index: {}]
  %s6 = sld [smem:[#allocation0]]
  $region30: #{tpu_custom_call.1} parent=0
    _
  %s8 = ssub.s32 1, %s6
  %s9 = scalar_select 0, %s8, %s6
  $region1: #{tpu_custom_call.1} parent=0
    #allocation2 [shape = 'u8[114688]{0}', space=vmem, size = 0x1c000, scoped, tag = 'output window, operand 0, single buffered']
    #allocation3 [shape = 's32[1]{0}', space=sflag, size = 0x4, scoped, tag = 'scoped memory for tpu_custom_call.1']
    %10 = vsyncpa [#allocation3], 0
    // Predicated region
    $region2: #{tpu_custom_call.1} parent=1 // pred_check
      _
    $region3: #{tpu_custom_call.1} parent=1 // pred_check_branch
      %12 = sbr.rel (0) target = $region5
    $region4: #{tpu_custom_call.1} parent=1 // pred_region
      _
    $region5: #{tpu_custom_call.1} parent=1 // pred_fallthru
      _
    // Predicated region
    $region6: #{tpu_custom_call.1} parent=1 // pred_check
      _
    $region7: #{tpu_custom_call.1} parent=1 // pred_check_branch
      %14 = sbr.rel (0) target = $region9
    $region8: #{tpu_custom_call.1} parent=1 // pred_region
      _
    $region9: #{tpu_custom_call.1} parent=1 // pred_fallthru
      _
    // Predicated region
    $region10: #{tpu_custom_call.1} parent=1 // pred_check
      _
    $region11: #{tpu_custom_call.1} parent=1 // pred_check_branch
      %16 = sbr.rel (0) target = $region13
    $region12: #{tpu_custom_call.1} parent=1 // pred_region
      _
    $region13: #{tpu_custom_call.1} parent=1 // pred_fallthru
      _
    // Predicated region
    $region14: #{tpu_custom_call.1} parent=1 // pred_check
      _
    $region15: #{tpu_custom_call.1} parent=1 // pred_check_branch
      %18 = sbr.rel (0) target = $region17
    $region16: #{tpu_custom_call.1} parent=1 // pred_region
      _
    $region17: #{tpu_custom_call.1} parent=1 // pred_fallthru
      _
    // Predicated region
    $region18: #{tpu_custom_call.1} parent=1 // pred_check
      _
    $region19: #{tpu_custom_call.1} parent=1 // pred_check_branch
      %20 = sbr.rel (0) target = $region21
    $region20: #{tpu_custom_call.1} parent=1 // pred_region
      _
    $region21: #{tpu_custom_call.1} parent=1 // pred_fallthru
      _
    %v22 = vld [vmem:[%s0] sm:$0xff]
    %v23 = vld [vmem:[%s0 + $0x8] sm:$0xff]
    %v24 = vld [vmem:[%s0 + $0x10] sm:$0xff]
    %v25 = vld [vmem:[%s0 + $0x18] sm:$0xf]
    %v26 = vld [vmem:[%s0 + $0x1c] sm:$0xff]
    %v27 = vld [vmem:[%s0 + $0x24] sm:$0xff]
    %v28 = vld [vmem:[%s0 + $0x2c] sm:$0xff]
    %v29 = vld [vmem:[%s0 + $0x34] sm:$0xf]
    %v30 = vld [vmem:[%s0 + $0x38] sm:$0xff]
    %v31 = vld [vmem:[%s0 + $0x40] sm:$0xff]
    %v32 = vld [vmem:[%s0 + $0x48] sm:$0xff]
    %v33 = vld [vmem:[%s0 + $0x50] sm:$0xf]
    %v34 = vld [vmem:[%s0 + $0x54] sm:$0xff]
    %v35 = vld [vmem:[%s0 + $0x5c] sm:$0xff]
    %v36 = vld [vmem:[%s0 + $0x64] sm:$0xff]
    %v37 = vld [vmem:[%s0 + $0x6c] sm:$0xf]
    %v38 = vld [vmem:[%s0 + $0x70] sm:$0xff]
    %v39 = vld [vmem:[%s0 + $0x78] sm:$0xff]
    %v40 = vld [vmem:[%s0 + $0x80] sm:$0xff]
    %v41 = vld [vmem:[%s0 + $0x88] sm:$0xf]
    %v42 = vld [vmem:[%s0 + $0x8c] sm:$0xff]
    %v43 = vld [vmem:[%s0 + $0x94] sm:$0xff]
    %v44 = vld [vmem:[%s0 + $0x9c] sm:$0xff]
    %v45 = vld [vmem:[%s0 + $0xa4] sm:$0xf]
    %v46 = vld [vmem:[%s0 + $0xa8] sm:$0xff]
    %v47 = vld [vmem:[%s0 + $0xb0] sm:$0xff]
    %v48 = vld [vmem:[%s0 + $0xb8] sm:$0xff]
    %v49 = vld [vmem:[%s0 + $0xc0] sm:$0xf]
    %v50 = vld [vmem:[%s0 + $0xc4] sm:$0xff]
    %v51 = vld [vmem:[%s0 + $0xcc] sm:$0xff]
    %v52 = vld [vmem:[%s0 + $0xd4] sm:$0xff]
    %v53 = vld [vmem:[%s0 + $0xdc] sm:$0xf]
    %v54 = vld [vmem:[%s1] sm:$0xf]
    %v55 = vld [vmem:[%s1 + $0x4] sm:$0xf]
    %v56 = vld [vmem:[%s1 + $0x8] sm:$0xf]
    %v57 = vld [vmem:[%s1 + $0xc] sm:$0xf]
    %v58 = vld [vmem:[%s1 + $0x10] sm:$0xf]
    %v59 = vld [vmem:[%s1 + $0x14] sm:$0xf]
    %v60 = vld [vmem:[%s1 + $0x18] sm:$0xf]
    %v61 = vld [vmem:[%s1 + $0x1c] sm:$0xf]
    %v62 = vld [vmem:[%s1 + $0x20] sm:$0xf]
    %v63 = vld [vmem:[%s1 + $0x24] sm:$0xf]
    %v64 = vld [vmem:[%s1 + $0x28] sm:$0xf]
    %v65 = vld [vmem:[%s1 + $0x2c] sm:$0xf]
    %v66 = vld [vmem:[%s1 + $0x30] sm:$0xf]
    %v67 = vld [vmem:[%s1 + $0x34] sm:$0xf]
    %v68 = vld [vmem:[%s1 + $0x38] sm:$0xf]
    %v69 = vld [vmem:[%s1 + $0x3c] sm:$0xf]
    %v70 = vld [vmem:[%s1 + $0x40] sm:$0xf]
    %v71 = vld [vmem:[%s1 + $0x44] sm:$0xf]
    %v72 = vld [vmem:[%s1 + $0x48] sm:$0xf]
    %v73 = vld [vmem:[%s1 + $0x4c] sm:$0xf]
    %v74 = vld [vmem:[%s1 + $0x50] sm:$0xf]
    %v75 = vld [vmem:[%s1 + $0x54] sm:$0xf]
    %v76 = vld [vmem:[%s1 + $0x58] sm:$0xf]
    %v77 = vld [vmem:[%s1 + $0x5c] sm:$0xf]
    %v78 = vld [vmem:[%s1 + $0x60] sm:$0xf]
    %v79 = vld [vmem:[%s1 + $0x64] sm:$0xf]
    %v80 = vld [vmem:[%s1 + $0x68] sm:$0xf]
    %v81 = vld [vmem:[%s1 + $0x6c] sm:$0xf]
    %v82 = vld [vmem:[%s1 + $0x70] sm:$0xf]
    %v83 = vld [vmem:[%s1 + $0x74] sm:$0xf]
    %v84 = vld [vmem:[%s1 + $0x78] sm:$0xf]
    %v85 = vld [vmem:[%s1 + $0x7c] sm:$0xf]
    %v86 = vld [vmem:[%s1 + $0x80] sm:$0xf]
    %v87 = vld [vmem:[%s1 + $0x84] sm:$0xf]
    %v88 = vld [vmem:[%s1 + $0x88] sm:$0xf]
    %v89 = vld [vmem:[%s1 + $0x8c] sm:$0xf]
    %v90 = vld [vmem:[%s1 + $0x90] sm:$0xf]
    %v91 = vld [vmem:[%s1 + $0x94] sm:$0xf]
    %v92 = vld [vmem:[%s1 + $0x98] sm:$0xf]
    %v93 = vld [vmem:[%s1 + $0x9c] sm:$0xf]
    %v94 = vld [vmem:[%s1 + $0xa0] sm:$0xf]
    %v95 = vld [vmem:[%s1 + $0xa4] sm:$0xf]
    %v96 = vld [vmem:[%s1 + $0xa8] sm:$0xf]
    %v97 = vld [vmem:[%s1 + $0xac] sm:$0xf]
    %v98 = vld [vmem:[%s1 + $0xb0] sm:$0xf]
    %v99 = vld [vmem:[%s1 + $0xb4] sm:$0xf]
    %v100 = vld [vmem:[%s1 + $0xb8] sm:$0xf]
    %v101 = vld [vmem:[%s1 + $0xbc] sm:$0xf]
    %v102 = vld [vmem:[%s1 + $0xc0] sm:$0xf]
    %v103 = vld [vmem:[%s1 + $0xc4] sm:$0xf]
    %v104 = vld [vmem:[%s1 + $0xc8] sm:$0xf]
    %v105 = vld [vmem:[%s1 + $0xcc] sm:$0xf]
    %v106 = vld [vmem:[%s1 + $0xd0] sm:$0xf]
    %v107 = vld [vmem:[%s1 + $0xd4] sm:$0xf]
    %v108 = vld [vmem:[%s1 + $0xd8] sm:$0xf]
    %v109 = vld [vmem:[%s1 + $0xdc] sm:$0xf]
    %v110 = vld [vmem:[%s1 + $0xe0] sm:$0xf]
    %v111 = vld [vmem:[%s1 + $0xe4] sm:$0xf]
    %v112 = vld [vmem:[%s1 + $0xe8] sm:$0xf]
    %v113 = vld [vmem:[%s1 + $0xec] sm:$0xf]
    %v114 = vld [vmem:[%s1 + $0xf0] sm:$0xf]
    %v115 = vld [vmem:[%s1 + $0xf4] sm:$0xf]
    %v116 = vld [vmem:[%s1 + $0xf8] sm:$0xf]
    %v117 = vld [vmem:[%s1 + $0xfc] sm:$0xf]
    %v118 = vld [vmem:[%s1 + $0x100] sm:$0xf]
    %v119 = vld [vmem:[%s1 + $0x104] sm:$0xf]
    %v120 = vld [vmem:[%s1 + $0x108] sm:$0xf]
    %v121 = vld [vmem:[%s1 + $0x10c] sm:$0xf]
    %v122 = vld [vmem:[%s1 + $0x110] sm:$0xf]
    %v123 = vld [vmem:[%s1 + $0x114] sm:$0xf]
    %v124 = vld [vmem:[%s1 + $0x118] sm:$0xf]
    %v125 = vld [vmem:[%s1 + $0x11c] sm:$0xf]
    %v126 = vld [vmem:[%s1 + $0x120] sm:$0xf]
    %v127 = vld [vmem:[%s1 + $0x124] sm:$0xf]
    %v128 = vld [vmem:[%s1 + $0x128] sm:$0xf]
    %v129 = vld [vmem:[%s1 + $0x12c] sm:$0xf]
    %v130 = vld [vmem:[%s1 + $0x130] sm:$0xf]
    %v131 = vld [vmem:[%s1 + $0x134] sm:$0xf]
    %v132 = vld [vmem:[%s1 + $0x138] sm:$0xf]
    %v133 = vld [vmem:[%s1 + $0x13c] sm:$0xf]
    %v134 = vld [vmem:[%s1 + $0x140] sm:$0xf]
    %v135 = vld [vmem:[%s1 + $0x144] sm:$0xf]
    %v136 = vld [vmem:[%s1 + $0x148] sm:$0xf]
    %v137 = vld [vmem:[%s1 + $0x14c] sm:$0xf]
    %v138 = vld [vmem:[%s1 + $0x150] sm:$0xf]
    %v139 = vld [vmem:[%s1 + $0x154] sm:$0xf]
    %v140 = vld [vmem:[%s1 + $0x158] sm:$0xf]
    %v141 = vld [vmem:[%s1 + $0x15c] sm:$0xf]
    %v142 = vld [vmem:[%s1 + $0x160] sm:$0xf]
    %v143 = vld [vmem:[%s1 + $0x164] sm:$0xf]
    %v144 = vld [vmem:[%s1 + $0x168] sm:$0xf]
    %v145 = vld [vmem:[%s1 + $0x16c] sm:$0xf]
    %v146 = vld [vmem:[%s1 + $0x170] sm:$0xf]
    %v147 = vld [vmem:[%s1 + $0x174] sm:$0xf]
    %v148 = vld [vmem:[%s1 + $0x178] sm:$0xf]
    %v149 = vld [vmem:[%s1 + $0x17c] sm:$0xf]
    %v150 = vld [vmem:[%s1 + $0x180] sm:$0xf]
    %v151 = vld [vmem:[%s1 + $0x184] sm:$0xf]
    %v152 = vld [vmem:[%s2] sm:$0x1]
    %v154 = vperm.slane %v152, 0
    %v188 = vunpack.c.l.b16 %v22
    %v189 = vunpack.c.h.b16 %v22
    %v190 = vunpack.c.l.b16 %v23
    %v191 = vunpack.c.h.b16 %v23
    %v192 = vunpack.c.l.b16 %v24
    %v193 = vunpack.c.h.b16 %v24
    %v194 = vunpack.c.l.b16 %v25
    %v195 = vunpack.c.l.b16 %v26
    %v196 = vunpack.c.h.b16 %v26
    %v197 = vunpack.c.l.b16 %v27
    %v198 = vunpack.c.h.b16 %v27
    %v199 = vunpack.c.l.b16 %v28
    %v200 = vunpack.c.h.b16 %v28
    %v201 = vunpack.c.l.b16 %v29
    %v202 = vunpack.c.l.b16 %v30
    %v203 = vunpack.c.h.b16 %v30
    %v204 = vunpack.c.l.b16 %v31
    %v205 = vunpack.c.h.b16 %v31
    %v206 = vunpack.c.l.b16 %v32
    %v207 = vunpack.c.h.b16 %v32
    %v208 = vunpack.c.l.b16 %v33
    %v209 = vunpack.c.l.b16 %v34
    %v210 = vunpack.c.h.b16 %v34
    %v211 = vunpack.c.l.b16 %v35
    %v212 = vunpack.c.h.b16 %v35
    %v213 = vunpack.c.l.b16 %v36
    %v214 = vunpack.c.h.b16 %v36
    %v215 = vunpack.c.l.b16 %v37
    %v216 = vunpack.c.l.b16 %v38
    %v217 = vunpack.c.h.b16 %v38
    %v218 = vunpack.c.l.b16 %v39
    %v219 = vunpack.c.h.b16 %v39
    %v220 = vunpack.c.l.b16 %v40
    %v221 = vunpack.c.h.b16 %v40
    %v222 = vunpack.c.l.b16 %v41
    %v223 = vunpack.c.l.b16 %v42
    %v224 = vunpack.c.h.b16 %v42
    %v225 = vunpack.c.l.b16 %v43
    %v226 = vunpack.c.h.b16 %v43
    %v227 = vunpack.c.l.b16 %v44
    %v228 = vunpack.c.h.b16 %v44
    %v229 = vunpack.c.l.b16 %v45
    %v230 = vunpack.c.l.b16 %v46
    %v231 = vunpack.c.h.b16 %v46
    %v232 = vunpack.c.l.b16 %v47
    %v233 = vunpack.c.h.b16 %v47
    %v234 = vunpack.c.l.b16 %v48
    %v235 = vunpack.c.h.b16 %v48
    %v236 = vunpack.c.l.b16 %v49
    %v237 = vunpack.c.l.b16 %v50
    %v238 = vunpack.c.h.b16 %v50
    %v239 = vunpack.c.l.b16 %v51
    %v240 = vunpack.c.h.b16 %v51
    %v241 = vunpack.c.l.b16 %v52
    %v242 = vunpack.c.h.b16 %v52
    %v243 = vunpack.c.l.b16 %v53
    %v244 = vpack.c.b16 %v195, %v188
    %v245 = vpack.c.b16 %v196, %v189
    %v246 = vpack.c.b16 %v197, %v190
    %v247 = vpack.c.b16 %v198, %v191
    %v248 = vpack.c.b16 %v199, %v192
    %v249 = vpack.c.b16 %v200, %v193
    %v250 = vpack.c.b16 %v201, %v194
    %v251 = vpack.c.b16 %v209, %v202
    %v252 = vpack.c.b16 %v210, %v203
    %v253 = vpack.c.b16 %v211, %v204
    %v254 = vpack.c.b16 %v212, %v205
    %v255 = vpack.c.b16 %v213, %v206
    %v256 = vpack.c.b16 %v214, %v207
    %v257 = vpack.c.b16 %v215, %v208
    %v258 = vpack.c.b16 %v223, %v216
    %v259 = vpack.c.b16 %v224, %v217
    %v260 = vpack.c.b16 %v225, %v218
    %v261 = vpack.c.b16 %v226, %v219
    %v262 = vpack.c.b16 %v227, %v220
    %v263 = vpack.c.b16 %v228, %v221
    %v264 = vpack.c.b16 %v229, %v222
    %v265 = vpack.c.b16 %v237, %v230
    %v266 = vpack.c.b16 %v238, %v231
    %v267 = vpack.c.b16 %v239, %v232
    %v268 = vpack.c.b16 %v240, %v233
    %v269 = vpack.c.b16 %v241, %v234
    %v270 = vpack.c.b16 %v242, %v235
    %v271 = vpack.c.b16 %v243, %v236
    %v394 = vunpack.c.l.b16 %v54
    %v395 = vunpack.c.l.b16 %v55
    %v396 = vunpack.c.l.b16 %v56
    %v397 = vunpack.c.l.b16 %v57
    %v398 = vunpack.c.l.b16 %v58
    %v399 = vunpack.c.l.b16 %v59
    %v400 = vunpack.c.l.b16 %v60
    %v401 = vunpack.c.l.b16 %v61
    %v402 = vunpack.c.l.b16 %v62
    %v403 = vunpack.c.l.b16 %v63
    %v404 = vunpack.c.l.b16 %v64
    %v405 = vunpack.c.l.b16 %v65
    %v406 = vunpack.c.l.b16 %v66
    %v407 = vunpack.c.l.b16 %v67
    %v408 = vunpack.c.l.b16 %v68
    %v409 = vunpack.c.l.b16 %v69
    %v410 = vunpack.c.l.b16 %v70
    %v411 = vunpack.c.l.b16 %v71
    %v412 = vunpack.c.l.b16 %v72
    %v413 = vunpack.c.l.b16 %v73
    %v414 = vunpack.c.l.b16 %v74
    %v415 = vunpack.c.l.b16 %v75
    %v416 = vunpack.c.l.b16 %v76
    %v417 = vunpack.c.l.b16 %v77
    %v418 = vunpack.c.l.b16 %v78
    %v419 = vunpack.c.l.b16 %v79
    %v420 = vunpack.c.l.b16 %v80
    %v421 = vunpack.c.l.b16 %v81
    %v422 = vunpack.c.l.b16 %v82
    %v423 = vunpack.c.l.b16 %v83
    %v424 = vunpack.c.l.b16 %v84
    %v425 = vunpack.c.l.b16 %v85
    %v426 = vunpack.c.l.b16 %v86
    %v427 = vunpack.c.l.b16 %v87
    %v428 = vunpack.c.l.b16 %v88
    %v429 = vunpack.c.l.b16 %v89
    %v430 = vunpack.c.l.b16 %v90
    %v431 = vunpack.c.l.b16 %v91
    %v432 = vunpack.c.l.b16 %v92
    %v433 = vunpack.c.l.b16 %v93
    %v434 = vunpack.c.l.b16 %v94
    %v435 = vunpack.c.l.b16 %v95
    %v436 = vunpack.c.l.b16 %v96
    %v437 = vunpack.c.l.b16 %v97
    %v438 = vunpack.c.l.b16 %v98
    %v439 = vunpack.c.l.b16 %v99
    %v440 = vunpack.c.l.b16 %v100
    %v441 = vunpack.c.l.b16 %v101
    %v442 = vunpack.c.l.b16 %v102
    %v443 = vunpack.c.l.b16 %v103
    %v444 = vunpack.c.l.b16 %v104
    %v445 = vunpack.c.l.b16 %v105
    %v446 = vunpack.c.l.b16 %v106
    %v447 = vunpack.c.l.b16 %v107
    %v448 = vunpack.c.l.b16 %v108
    %v449 = vunpack.c.l.b16 %v109
    %v450 = vunpack.c.l.b16 %v110
    %v451 = vunpack.c.l.b16 %v111
    %v452 = vunpack.c.l.b16 %v112
    %v453 = vunpack.c.l.b16 %v113
    %v454 = vunpack.c.l.b16 %v114
    %v455 = vunpack.c.l.b16 %v115
    %v456 = vunpack.c.l.b16 %v116
    %v457 = vunpack.c.l.b16 %v117
    %v458 = vunpack.c.l.b16 %v118
    %v459 = vunpack.c.l.b16 %v119
    %v460 = vunpack.c.l.b16 %v120
    %v461 = vunpack.c.l.b16 %v121
    %v462 = vunpack.c.l.b16 %v122
    %v463 = vunpack.c.l.b16 %v123
    %v464 = vunpack.c.l.b16 %v124
    %v465 = vunpack.c.l.b16 %v125
    %v466 = vunpack.c.l.b16 %v126
    %v467 = vunpack.c.l.b16 %v127
    %v468 = vunpack.c.l.b16 %v128
    %v469 = vunpack.c.l.b16 %v129
    %v470 = vunpack.c.l.b16 %v130
    %v471 = vunpack.c.l.b16 %v131
    %v472 = vunpack.c.l.b16 %v132
    %v473 = vunpack.c.l.b16 %v133
    %v474 = vunpack.c.l.b16 %v134
    %v475 = vunpack.c.l.b16 %v135
    %v476 = vunpack.c.l.b16 %v136
    %v477 = vunpack.c.l.b16 %v137
    %v478 = vunpack.c.l.b16 %v138
    %v479 = vunpack.c.l.b16 %v139
    %v480 = vunpack.c.l.b16 %v140
    %v481 = vunpack.c.l.b16 %v141
    %v482 = vunpack.c.l.b16 %v142
    %v483 = vunpack.c.l.b16 %v143
    %v484 = vunpack.c.l.b16 %v144
    %v485 = vunpack.c.l.b16 %v145
    %v486 = vunpack.c.l.b16 %v146
    %v487 = vunpack.c.l.b16 %v147
    %v488 = vunpack.c.l.b16 %v148
    %v489 = vunpack.c.l.b16 %v149
    %v490 = vunpack.c.l.b16 %v150
    %v491 = vunpack.c.l.b16 %v151
    %v492 = vpack.c.b16 %v395, %v394
    %v493 = vpack.c.b16 %v397, %v396
    %v494 = vpack.c.b16 %v399, %v398
    %v495 = vpack.c.b16 %v401, %v400
    %v496 = vpack.c.b16 %v403, %v402
    %v497 = vpack.c.b16 %v405, %v404
    %v498 = vpack.c.b16 %v407, %v406
    %v499 = vpack.c.b16 %v409, %v408
    %v500 = vpack.c.b16 %v411, %v410
    %v501 = vpack.c.b16 %v413, %v412
    %v502 = vpack.c.b16 %v415, %v414
    %v503 = vpack.c.b16 %v417, %v416
    %v504 = vpack.c.b16 %v419, %v418
    %v505 = vpack.c.b16 %v421, %v420
    %v506 = vpack.c.b16 %v423, %v422
    %v507 = vpack.c.b16 %v425, %v424
    %v508 = vpack.c.b16 %v427, %v426
    %v509 = vpack.c.b16 %v429, %v428
    %v510 = vpack.c.b16 %v431, %v430
    %v511 = vpack.c.b16 %v433, %v432
    %v512 = vpack.c.b16 %v435, %v434
    %v513 = vpack.c.b16 %v437, %v436
    %v514 = vpack.c.b16 %v439, %v438
    %v515 = vpack.c.b16 %v441, %v440
    %v516 = vpack.c.b16 %v443, %v442
    %v517 = vpack.c.b16 %v445, %v444
    %v518 = vpack.c.b16 %v447, %v446
    %v519 = vpack.c.b16 %v449, %v448
    %v520 = vpack.c.b16 %v451, %v450
    %v521 = vpack.c.b16 %v453, %v452
    %v522 = vpack.c.b16 %v455, %v454
    %v523 = vpack.c.b16 %v457, %v456
    %v524 = vpack.c.b16 %v459, %v458
    %v525 = vpack.c.b16 %v461, %v460
    %v526 = vpack.c.b16 %v463, %v462
    %v527 = vpack.c.b16 %v465, %v464
    %v528 = vpack.c.b16 %v467, %v466
    %v529 = vpack.c.b16 %v469, %v468
    %v530 = vpack.c.b16 %v471, %v470
    %v531 = vpack.c.b16 %v473, %v472
    %v532 = vpack.c.b16 %v475, %v474
    %v533 = vpack.c.b16 %v477, %v476
    %v534 = vpack.c.b16 %v479, %v478
    %v535 = vpack.c.b16 %v481, %v480
    %v536 = vpack.c.b16 %v483, %v482
    %v537 = vpack.c.b16 %v485, %v484
    %v538 = vpack.c.b16 %v487, %v486
    %v539 = vpack.c.b16 %v489, %v488
    %v540 = vpack.c.b16 %v491, %v490
    %vm590 = vcmask 130048
    %v592 = vsel %vm590, %v250, 0
    %v595 = vsel %vm590, %v257, 0
    %v598 = vsel %vm590, %v264, 0
    %v601 = vsel %vm590, %v271, 0
    %603 = vmatpush.bf16.msra.mxu0 %v499
    %604 = vmatpush.bf16.msra.mxu0 %v498
    %605 = vmatpush.bf16.msra.mxu0 %v497
    %606 = vmatpush.bf16.msra.mxu0 %v496
    %607 = vmatpush.bf16.msra.mxu0 %v495
    %608 = vmatpush.bf16.msra.mxu0 %v494
    %609 = vmatpush.bf16.msra.mxu0 %v493
    %610 = vmatpush.bf16.msra.mxu0 %v492
    %611 = vmatmul.bf16.gmra.mxu0 %v244
    %v612 = vpop.f32.mrf.mxu0
    %v613 = vadd.f32 %v154, %v612
    %v614 = vpop.f32.mrf.mxu0
    %v615 = vadd.f32 %v154, %v614
    %616 = vmatmul.bf16.gmra.mxu0 %v251
    %v617 = vpop.f32.mrf.mxu0
    %v618 = vadd.f32 %v154, %v617
    %v619 = vpop.f32.mrf.mxu0
    %v620 = vadd.f32 %v154, %v619
    %621 = vmatmul.bf16.gmra.mxu0 %v258
    %v622 = vpop.f32.mrf.mxu0
    %v623 = vadd.f32 %v154, %v622
    %v624 = vpop.f32.mrf.mxu0
    %v625 = vadd.f32 %v154, %v624
    %626 = vmatmul.bf16.gmra.mxu0 %v265
    %v627 = vpop.f32.mrf.mxu0
    %v628 = vadd.f32 %v154, %v627
    %v629 = vpop.f32.mrf.mxu0
    %v630 = vadd.f32 %v154, %v629
    %631 = vdwg.mxu0
    %632 = vmatpush.bf16.msra.mxu0 %v507
    %633 = vmatpush.bf16.msra.mxu0 %v506
    %634 = vmatpush.bf16.msra.mxu0 %v505
    %635 = vmatpush.bf16.msra.mxu0 %v504
    %636 = vmatpush.bf16.msra.mxu0 %v503
    %637 = vmatpush.bf16.msra.mxu0 %v502
    %638 = vmatpush.bf16.msra.mxu0 %v501
    %639 = vmatpush.bf16.msra.mxu0 %v500
    %640 = vmatmul.bf16.gmra.mxu0 %v245
    %v641 = vpop.f32.mrf.mxu0
    %v642 = vadd.f32 %v613, %v641
    %v643 = vpop.f32.mrf.mxu0
    %v644 = vadd.f32 %v615, %v643
    %645 = vmatmul.bf16.gmra.mxu0 %v252
    %v646 = vpop.f32.mrf.mxu0
    %v647 = vadd.f32 %v618, %v646
    %v648 = vpop.f32.mrf.mxu0
    %v649 = vadd.f32 %v620, %v648
    %650 = vmatmul.bf16.gmra.mxu0 %v259
    %v651 = vpop.f32.mrf.mxu0
    %v652 = vadd.f32 %v623, %v651
    %v653 = vpop.f32.mrf.mxu0
    %v654 = vadd.f32 %v625, %v653
    %655 = vmatmul.bf16.gmra.mxu0 %v266
    %v656 = vpop.f32.mrf.mxu0
    %v657 = vadd.f32 %v628, %v656
    %v658 = vpop.f32.mrf.mxu0
    %v659 = vadd.f32 %v630, %v658
    %660 = vdwg.mxu0
    %661 = vmatpush.bf16.msra.mxu0 %v515
    %662 = vmatpush.bf16.msra.mxu0 %v514
    %663 = vmatpush.bf16.msra.mxu0 %v513
    %664 = vmatpush.bf16.msra.mxu0 %v512
    %665 = vmatpush.bf16.msra.mxu0 %v511
    %666 = vmatpush.bf16.msra.mxu0 %v510
    %667 = vmatpush.bf16.msra.mxu0 %v509
    %668 = vmatpush.bf16.msra.mxu0 %v508
    %669 = vmatmul.bf16.gmra.mxu0 %v246
    %v670 = vpop.f32.mrf.mxu0
    %v671 = vadd.f32 %v642, %v670
    %v672 = vpop.f32.mrf.mxu0
    %v673 = vadd.f32 %v644, %v672
    %674 = vmatmul.bf16.gmra.mxu0 %v253
    %v675 = vpop.f32.mrf.mxu0
    %v676 = vadd.f32 %v647, %v675
    %v677 = vpop.f32.mrf.mxu0
    %v678 = vadd.f32 %v649, %v677
    %679 = vmatmul.bf16.gmra.mxu0 %v260
    %v680 = vpop.f32.mrf.mxu0
    %v681 = vadd.f32 %v652, %v680
    %v682 = vpop.f32.mrf.mxu0
    %v683 = vadd.f32 %v654, %v682
    %684 = vmatmul.bf16.gmra.mxu0 %v267
    %v685 = vpop.f32.mrf.mxu0
    %v686 = vadd.f32 %v657, %v685
    %v687 = vpop.f32.mrf.mxu0
    %v688 = vadd.f32 %v659, %v687
    %689 = vdwg.mxu0
    %690 = vmatpush.bf16.msra.mxu0 %v523
    %691 = vmatpush.bf16.msra.mxu0 %v522
    %692 = vmatpush.bf16.msra.mxu0 %v521
    %693 = vmatpush.bf16.msra.mxu0 %v520
    %694 = vmatpush.bf16.msra.mxu0 %v519
    %695 = vmatpush.bf16.msra.mxu0 %v518
    %696 = vmatpush.bf16.msra.mxu0 %v517
    %697 = vmatpush.bf16.msra.mxu0 %v516
    %698 = vmatmul.bf16.gmra.mxu0 %v247
    %v699 = vpop.f32.mrf.mxu0
    %v700 = vadd.f32 %v671, %v699
    %v701 = vpop.f32.mrf.mxu0
    %v702 = vadd.f32 %v673, %v701
    %703 = vmatmul.bf16.gmra.mxu0 %v254
    %v704 = vpop.f32.mrf.mxu0
    %v705 = vadd.f32 %v676, %v704
    %v706 = vpop.f32.mrf.mxu0
    %v707 = vadd.f32 %v678, %v706
    %708 = vmatmul.bf16.gmra.mxu0 %v261
    %v709 = vpop.f32.mrf.mxu0
    %v710 = vadd.f32 %v681, %v709
    %v711 = vpop.f32.mrf.mxu0
    %v712 = vadd.f32 %v683, %v711
    %713 = vmatmul.bf16.gmra.mxu0 %v268
    %v714 = vpop.f32.mrf.mxu0
    %v715 = vadd.f32 %v686, %v714
    %v716 = vpop.f32.mrf.mxu0
    %v717 = vadd.f32 %v688, %v716
    %718 = vdwg.mxu0
    %719 = vmatpush.bf16.msra.mxu0 %v531
    %720 = vmatpush.bf16.msra.mxu0 %v530
    %721 = vmatpush.bf16.msra.mxu0 %v529
    %722 = vmatpush.bf16.msra.mxu0 %v528
    %723 = vmatpush.bf16.msra.mxu0 %v527
    %724 = vmatpush.bf16.msra.mxu0 %v526
    %725 = vmatpush.bf16.msra.mxu0 %v525
    %726 = vmatpush.bf16.msra.mxu0 %v524
    %727 = vmatmul.bf16.gmra.mxu0 %v248
    %v728 = vpop.f32.mrf.mxu0
    %v729 = vadd.f32 %v700, %v728
    %v730 = vpop.f32.mrf.mxu0
    %v731 = vadd.f32 %v702, %v730
    %732 = vmatmul.bf16.gmra.mxu0 %v255
    %v733 = vpop.f32.mrf.mxu0
    %v734 = vadd.f32 %v705, %v733
    %v735 = vpop.f32.mrf.mxu0
    %v736 = vadd.f32 %v707, %v735
    %737 = vmatmul.bf16.gmra.mxu0 %v262
    %v738 = vpop.f32.mrf.mxu0
    %v739 = vadd.f32 %v710, %v738
    %v740 = vpop.f32.mrf.mxu0
    %v741 = vadd.f32 %v712, %v740
    %742 = vmatmul.bf16.gmra.mxu0 %v269
    %v743 = vpop.f32.mrf.mxu0
    %v744 = vadd.f32 %v715, %v743
    %v745 = vpop.f32.mrf.mxu0
    %v746 = vadd.f32 %v717, %v745
    %747 = vdwg.mxu0
    %748 = vmatpush.bf16.msra.mxu0 %v539
    %749 = vmatpush.bf16.msra.mxu0 %v538
    %750 = vmatpush.bf16.msra.mxu0 %v537
    %751 = vmatpush.bf16.msra.mxu0 %v536
    %752 = vmatpush.bf16.msra.mxu0 %v535
    %753 = vmatpush.bf16.msra.mxu0 %v534
    %754 = vmatpush.bf16.msra.mxu0 %v533
    %755 = vmatpush.bf16.msra.mxu0 %v532
    %756 = vmatmul.bf16.gmra.mxu0 %v249
    %v757 = vpop.f32.mrf.mxu0
    %v758 = vadd.f32 %v729, %v757
    %v759 = vpop.f32.mrf.mxu0
    %v760 = vadd.f32 %v731, %v759
    %761 = vmatmul.bf16.gmra.mxu0 %v256
    %v762 = vpop.f32.mrf.mxu0
    %v763 = vadd.f32 %v734, %v762
    %v764 = vpop.f32.mrf.mxu0
    %v765 = vadd.f32 %v736, %v764
    %766 = vmatmul.bf16.gmra.mxu0 %v263
    %v767 = vpop.f32.mrf.mxu0
    %v768 = vadd.f32 %v739, %v767
    %v769 = vpop.f32.mrf.mxu0
    %v770 = vadd.f32 %v741, %v769
    %771 = vmatmul.bf16.gmra.mxu0 %v270
    %v772 = vpop.f32.mrf.mxu0
    %v773 = vadd.f32 %v744, %v772
    %v774 = vpop.f32.mrf.mxu0
    %v775 = vadd.f32 %v746, %v774
    %776 = vdwg.mxu0
    %777 = vmatpush.bf16.msra.mxu0 0
    %778 = vmatpush.bf16.msra.mxu0 0
    %779 = vmatpush.bf16.msra.mxu0 0
    %780 = vmatpush.bf16.msra.mxu0 0
    %781 = vmatpush.bf16.msra.mxu0 0
    %782 = vmatpush.bf16.msra.mxu0 0
    %783 = vmatpush.bf16.msra.mxu0 0
    %784 = vmatpush.bf16.msra.mxu0 %v540
    %785 = vmatmul.bf16.gmra.mxu0 %v592
    %v786 = vpop.f32.mrf.mxu0
    %v787 = vadd.f32 %v758, %v786
    %v788 = vpop.f32.mrf.mxu0
    %v789 = vadd.f32 %v760, %v788
    %790 = vmatmul.bf16.gmra.mxu0 %v595
    %v791 = vpop.f32.mrf.mxu0
    %v792 = vadd.f32 %v763, %v791
    %v793 = vpop.f32.mrf.mxu0
    %v794 = vadd.f32 %v765, %v793
    %795 = vmatmul.bf16.gmra.mxu0 %v598
    %v796 = vpop.f32.mrf.mxu0
    %v797 = vadd.f32 %v768, %v796
    %v798 = vpop.f32.mrf.mxu0
    %v799 = vadd.f32 %v770, %v798
    %800 = vmatmul.bf16.gmra.mxu0 %v601
    %v801 = vpop.f32.mrf.mxu0
    %v802 = vadd.f32 %v773, %v801
    %v803 = vpop.f32.mrf.mxu0
    %v804 = vadd.f32 %v775, %v803
    %805 = vdwg.mxu0
    %v806 = vmax.f32 %v787, 0.0
    %v807 = vmax.f32 %v789, 0.0
    %v808 = vmax.f32 %v792, 0.0
    %v809 = vmax.f32 %v794, 0.0
    %v810 = vmax.f32 %v797, 0.0
    %v811 = vmax.f32 %v799, 0.0
    %v812 = vmax.f32 %v802, 0.0
    %v813 = vmax.f32 %v804, 0.0
    %v814 = vpack.c.bf16 %v807, %v806
    %v815 = vpack.c.bf16 %v809, %v808
    %v816 = vpack.c.bf16 %v811, %v810
    %v817 = vpack.c.bf16 %v813, %v812
    %v818 = vld [vmem:[%s3] sm:$0xff]
    %v819 = vld [vmem:[%s3 + $0x8] sm:$0xff]
    %v820 = vld [vmem:[%s3 + $0x10] sm:$0xff]
    %v821 = vld [vmem:[%s3 + $0x18] sm:$0xf]
    %v822 = vld [vmem:[%s3 + $0x1c] sm:$0xff]
    %v823 = vld [vmem:[%s3 + $0x24] sm:$0xff]
    %v824 = vld [vmem:[%s3 + $0x2c] sm:$0xff]
    %v825 = vld [vmem:[%s3 + $0x34] sm:$0xf]
    %v826 = vld [vmem:[%s3 + $0x38] sm:$0xff]
    %v827 = vld [vmem:[%s3 + $0x40] sm:$0xff]
    %v828 = vld [vmem:[%s3 + $0x48] sm:$0xff]
    %v829 = vld [vmem:[%s3 + $0x50] sm:$0xf]
    %v830 = vld [vmem:[%s3 + $0x54] sm:$0xff]
    %v831 = vld [vmem:[%s3 + $0x5c] sm:$0xff]
    %v832 = vld [vmem:[%s3 + $0x64] sm:$0xff]
    %v833 = vld [vmem:[%s3 + $0x6c] sm:$0xf]
    %v834 = vld [vmem:[%s4] sm:$0x7f]
    %v836 = vperm.slane %v834, 0
    %v837 = vperm.slane %v834, 1
    %v838 = vperm.slane %v834, 2
    %v839 = vperm.slane %v834, 3
    %v840 = vperm.slane %v834, 4
    %v841 = vperm.slane %v834, 5
    %v842 = vperm.slane %v834, 6
    %v866 = vunpack.c.l.b16 %v818
    %v867 = vunpack.c.h.b16 %v818
    %v868 = vunpack.c.l.b16 %v819
    %v869 = vunpack.c.h.b16 %v819
    %v870 = vunpack.c.l.b16 %v820
    %v871 = vunpack.c.h.b16 %v820
    %v872 = vunpack.c.l.b16 %v821
    %v873 = vunpack.c.l.b16 %v822
    %v874 = vunpack.c.h.b16 %v822
    %v875 = vunpack.c.l.b16 %v823
    %v876 = vunpack.c.h.b16 %v823
    %v877 = vunpack.c.l.b16 %v824
    %v878 = vunpack.c.h.b16 %v824
    %v879 = vunpack.c.l.b16 %v825
    %v880 = vunpack.c.l.b16 %v826
    %v881 = vunpack.c.h.b16 %v826
    %v882 = vunpack.c.l.b16 %v827
    %v883 = vunpack.c.h.b16 %v827
    %v884 = vunpack.c.l.b16 %v828
    %v885 = vunpack.c.h.b16 %v828
    %v886 = vunpack.c.l.b16 %v829
    %v887 = vunpack.c.l.b16 %v830
    %v888 = vunpack.c.h.b16 %v830
    %v889 = vunpack.c.l.b16 %v831
    %v890 = vunpack.c.h.b16 %v831
    %v891 = vunpack.c.l.b16 %v832
    %v892 = vunpack.c.h.b16 %v832
    %v893 = vunpack.c.l.b16 %v833
    %v894 = vpack.c.b16 %v873, %v866
    %v895 = vpack.c.b16 %v874, %v867
    %v896 = vpack.c.b16 %v875, %v868
    %v897 = vpack.c.b16 %v876, %v869
    %v898 = vpack.c.b16 %v877, %v870
    %v899 = vpack.c.b16 %v878, %v871
    %v900 = vpack.c.b16 %v879, %v872
    %v901 = vpack.c.b16 %v887, %v880
    %v902 = vpack.c.b16 %v888, %v881
    %v903 = vpack.c.b16 %v889, %v882
    %v904 = vpack.c.b16 %v890, %v883
    %v905 = vpack.c.b16 %v891, %v884
    %v906 = vpack.c.b16 %v892, %v885
    %v907 = vpack.c.b16 %v893, %v886
    %vm922 = vcmask 261120
    %v924 = vsel %vm922, %v814, 0
    %v927 = vsel %vm922, %v815, 0
    %v930 = vsel %vm922, %v816, 0
    %v933 = vsel %vm922, %v817, 0
    %935 = vmatpush.bf16.msra.mxu0 0
    %936 = vmatpush.bf16.msra.mxu0 0
    %937 = vmatpush.bf16.msra.mxu0 0
    %938 = vmatpush.bf16.msra.mxu0 0
    %939 = vmatpush.bf16.msra.mxu0 0
    %940 = vmatpush.bf16.msra.mxu0 0
    %941 = vmatpush.bf16.msra.mxu0 %v901
    %942 = vmatpush.bf16.msra.mxu0 %v894
    %943 = vmatmul.bf16.gmra.mxu0 %v924
    %v944 = vpop.f32.mrf.mxu0
    %v945 = vadd.f32 %v836, %v944
    %v946 = vpop.f32.mrf.mxu0
    %v947 = vadd.f32 %v836, %v946
    %948 = vmatmul.bf16.gmra.mxu0 %v927
    %v949 = vpop.f32.mrf.mxu0
    %v950 = vadd.f32 %v836, %v949
    %v951 = vpop.f32.mrf.mxu0
    %v952 = vadd.f32 %v836, %v951
    %953 = vmatmul.bf16.gmra.mxu0 %v930
    %v954 = vpop.f32.mrf.mxu0
    %v955 = vadd.f32 %v836, %v954
    %v956 = vpop.f32.mrf.mxu0
    %v957 = vadd.f32 %v836, %v956
    %958 = vmatmul.bf16.gmra.mxu0 %v933
    %v959 = vpop.f32.mrf.mxu0
    %v960 = vadd.f32 %v836, %v959
    %v961 = vpop.f32.mrf.mxu0
    %v962 = vadd.f32 %v836, %v961
    %963 = vdwg.mxu0
    %964 = vmatpush.bf16.msra.mxu0 0
    %965 = vmatpush.bf16.msra.mxu0 0
    %966 = vmatpush.bf16.msra.mxu0 0
    %967 = vmatpush.bf16.msra.mxu0 0
    %968 = vmatpush.bf16.msra.mxu0 0
    %969 = vmatpush.bf16.msra.mxu0 0
    %970 = vmatpush.bf16.msra.mxu0 %v902
    %971 = vmatpush.bf16.msra.mxu0 %v895
    %972 = vmatmul.bf16.gmra.mxu0 %v924
    %v973 = vpop.f32.mrf.mxu0
    %v974 = vadd.f32 %v837, %v973
    %v975 = vpop.f32.mrf.mxu0
    %v976 = vadd.f32 %v837, %v975
    %977 = vmatmul.bf16.gmra.mxu0 %v927
    %v978 = vpop.f32.mrf.mxu0
    %v979 = vadd.f32 %v837, %v978
    %v980 = vpop.f32.mrf.mxu0
    %v981 = vadd.f32 %v837, %v980
    %982 = vmatmul.bf16.gmra.mxu0 %v930
    %v983 = vpop.f32.mrf.mxu0
    %v984 = vadd.f32 %v837, %v983
    %v985 = vpop.f32.mrf.mxu0
    %v986 = vadd.f32 %v837, %v985
    %987 = vmatmul.bf16.gmra.mxu0 %v933
    %v988 = vpop.f32.mrf.mxu0
    %v989 = vadd.f32 %v837, %v988
    %v990 = vpop.f32.mrf.mxu0
    %v991 = vadd.f32 %v837, %v990
    %992 = vdwg.mxu0
    %993 = vmatpush.bf16.msra.mxu0 0
    %994 = vmatpush.bf16.msra.mxu0 0
    %995 = vmatpush.bf16.msra.mxu0 0
    %996 = vmatpush.bf16.msra.mxu0 0
    %997 = vmatpush.bf16.msra.mxu0 0
    %998 = vmatpush.bf16.msra.mxu0 0
    %999 = vmatpush.bf16.msra.mxu0 %v903
    %1000 = vmatpush.bf16.msra.mxu0 %v896
    %1001 = vmatmul.bf16.gmra.mxu0 %v924
    %v1002 = vpop.f32.mrf.mxu0
    %v1003 = vadd.f32 %v838, %v1002
    %v1004 = vpop.f32.mrf.mxu0
    %v1005 = vadd.f32 %v838, %v1004
    %1006 = vmatmul.bf16.gmra.mxu0 %v927
    %v1007 = vpop.f32.mrf.mxu0
    %v1008 = vadd.f32 %v838, %v1007
    %v1009 = vpop.f32.mrf.mxu0
    %v1010 = vadd.f32 %v838, %v1009
    %1011 = vmatmul.bf16.gmra.mxu0 %v930
    %v1012 = vpop.f32.mrf.mxu0
    %v1013 = vadd.f32 %v838, %v1012
    %v1014 = vpop.f32.mrf.mxu0
    %v1015 = vadd.f32 %v838, %v1014
    %1016 = vmatmul.bf16.gmra.mxu0 %v933
    %v1017 = vpop.f32.mrf.mxu0
    %v1018 = vadd.f32 %v838, %v1017
    %v1019 = vpop.f32.mrf.mxu0
    %v1020 = vadd.f32 %v838, %v1019
    %1021 = vdwg.mxu0
    %1022 = vmatpush.bf16.msra.mxu0 0
    %1023 = vmatpush.bf16.msra.mxu0 0
    %1024 = vmatpush.bf16.msra.mxu0 0
    %1025 = vmatpush.bf16.msra.mxu0 0
    %1026 = vmatpush.bf16.msra.mxu0 0
    %1027 = vmatpush.bf16.msra.mxu0 0
    %1028 = vmatpush.bf16.msra.mxu0 %v904
    %1029 = vmatpush.bf16.msra.mxu0 %v897
    %1030 = vmatmul.bf16.gmra.mxu0 %v924
    %v1031 = vpop.f32.mrf.mxu0
    %v1032 = vadd.f32 %v839, %v1031
    %v1033 = vpop.f32.mrf.mxu0
    %v1034 = vadd.f32 %v839, %v1033
    %1035 = vmatmul.bf16.gmra.mxu0 %v927
    %v1036 = vpop.f32.mrf.mxu0
    %v1037 = vadd.f32 %v839, %v1036
    %v1038 = vpop.f32.mrf.mxu0
    %v1039 = vadd.f32 %v839, %v1038
    %1040 = vmatmul.bf16.gmra.mxu0 %v930
    %v1041 = vpop.f32.mrf.mxu0
    %v1042 = vadd.f32 %v839, %v1041
    %v1043 = vpop.f32.mrf.mxu0
    %v1044 = vadd.f32 %v839, %v1043
    %1045 = vmatmul.bf16.gmra.mxu0 %v933
    %v1046 = vpop.f32.mrf.mxu0
    %v1047 = vadd.f32 %v839, %v1046
    %v1048 = vpop.f32.mrf.mxu0
    %v1049 = vadd.f32 %v839, %v1048
    %1050 = vdwg.mxu0
    %1051 = vmatpush.bf16.msra.mxu0 0
    %1052 = vmatpush.bf16.msra.mxu0 0
    %1053 = vmatpush.bf16.msra.mxu0 0
    %1054 = vmatpush.bf16.msra.mxu0 0
    %1055 = vmatpush.bf16.msra.mxu0 0
    %1056 = vmatpush.bf16.msra.mxu0 0
    %1057 = vmatpush.bf16.msra.mxu0 %v905
    %1058 = vmatpush.bf16.msra.mxu0 %v898
    %1059 = vmatmul.bf16.gmra.mxu0 %v924
    %v1060 = vpop.f32.mrf.mxu0
    %v1061 = vadd.f32 %v840, %v1060
    %v1062 = vpop.f32.mrf.mxu0
    %v1063 = vadd.f32 %v840, %v1062
    %1064 = vmatmul.bf16.gmra.mxu0 %v927
    %v1065 = vpop.f32.mrf.mxu0
    %v1066 = vadd.f32 %v840, %v1065
    %v1067 = vpop.f32.mrf.mxu0
    %v1068 = vadd.f32 %v840, %v1067
    %1069 = vmatmul.bf16.gmra.mxu0 %v930
    %v1070 = vpop.f32.mrf.mxu0
    %v1071 = vadd.f32 %v840, %v1070
    %v1072 = vpop.f32.mrf.mxu0
    %v1073 = vadd.f32 %v840, %v1072
    %1074 = vmatmul.bf16.gmra.mxu0 %v933
    %v1075 = vpop.f32.mrf.mxu0
    %v1076 = vadd.f32 %v840, %v1075
    %v1077 = vpop.f32.mrf.mxu0
    %v1078 = vadd.f32 %v840, %v1077
    %1079 = vdwg.mxu0
    %1080 = vmatpush.bf16.msra.mxu0 0
    %1081 = vmatpush.bf16.msra.mxu0 0
    %1082 = vmatpush.bf16.msra.mxu0 0
    %1083 = vmatpush.bf16.msra.mxu0 0
    %1084 = vmatpush.bf16.msra.mxu0 0
    %1085 = vmatpush.bf16.msra.mxu0 0
    %1086 = vmatpush.bf16.msra.mxu0 %v906
    %1087 = vmatpush.bf16.msra.mxu0 %v899
    %1088 = vmatmul.bf16.gmra.mxu0 %v924
    %v1089 = vpop.f32.mrf.mxu0
    %v1090 = vadd.f32 %v841, %v1089
    %v1091 = vpop.f32.mrf.mxu0
    %v1092 = vadd.f32 %v841, %v1091
    %1093 = vmatmul.bf16.gmra.mxu0 %v927
    %v1094 = vpop.f32.mrf.mxu0
    %v1095 = vadd.f32 %v841, %v1094
    %v1096 = vpop.f32.mrf.mxu0
    %v1097 = vadd.f32 %v841, %v1096
    %1098 = vmatmul.bf16.gmra.mxu0 %v930
    %v1099 = vpop.f32.mrf.mxu0
    %v1100 = vadd.f32 %v841, %v1099
    %v1101 = vpop.f32.mrf.mxu0
    %v1102 = vadd.f32 %v841, %v1101
    %1103 = vmatmul.bf16.gmra.mxu0 %v933
    %v1104 = vpop.f32.mrf.mxu0
    %v1105 = vadd.f32 %v841, %v1104
    %v1106 = vpop.f32.mrf.mxu0
    %v1107 = vadd.f32 %v841, %v1106
    %1108 = vdwg.mxu0
    %1109 = vmatpush.bf16.msra.mxu0 0
    %1110 = vmatpush.bf16.msra.mxu0 0
    %1111 = vmatpush.bf16.msra.mxu0 0
    %1112 = vmatpush.bf16.msra.mxu0 0
    %1113 = vmatpush.bf16.msra.mxu0 0
    %1114 = vmatpush.bf16.msra.mxu0 0
    %1115 = vmatpush.bf16.msra.mxu0 %v907
    %1116 = vmatpush.bf16.msra.mxu0 %v900
    %1117 = vmatmul.bf16.gmra.mxu0 %v924
    %v1118 = vpop.f32.mrf.mxu0
    %v1119 = vadd.f32 %v842, %v1118
    %v1120 = vpop.f32.mrf.mxu0
    %v1121 = vadd.f32 %v842, %v1120
    %1122 = vmatmul.bf16.gmra.mxu0 %v927
    %v1123 = vpop.f32.mrf.mxu0
    %v1124 = vadd.f32 %v842, %v1123
    %v1125 = vpop.f32.mrf.mxu0
    %v1126 = vadd.f32 %v842, %v1125
    %1127 = vmatmul.bf16.gmra.mxu0 %v930
    %v1128 = vpop.f32.mrf.mxu0
    %v1129 = vadd.f32 %v842, %v1128
    %v1130 = vpop.f32.mrf.mxu0
    %v1131 = vadd.f32 %v842, %v1130
    %1132 = vmatmul.bf16.gmra.mxu0 %v933
    %v1133 = vpop.f32.mrf.mxu0
    %v1134 = vadd.f32 %v842, %v1133
    %v1135 = vpop.f32.mrf.mxu0
    %v1136 = vadd.f32 %v842, %v1135
    %1137 = vdwg.mxu0
    %v1138 = vxor.u32 %v945, 2147483648
    %v1139 = vxor.u32 %v974, 2147483648
    %v1140 = vxor.u32 %v1003, 2147483648
    %v1141 = vxor.u32 %v1032, 2147483648
    %v1142 = vxor.u32 %v1061, 2147483648
    %v1143 = vxor.u32 %v1090, 2147483648
    %v1144 = vxor.u32 %v1119, 2147483648
    %v1145 = vxor.u32 %v947, 2147483648
    %v1146 = vxor.u32 %v976, 2147483648
    %v1147 = vxor.u32 %v1005, 2147483648
    %v1148 = vxor.u32 %v1034, 2147483648
    %v1149 = vxor.u32 %v1063, 2147483648
    %v1150 = vxor.u32 %v1092, 2147483648
    %v1151 = vxor.u32 %v1121, 2147483648
    %v1152 = vxor.u32 %v950, 2147483648
    %v1153 = vxor.u32 %v979, 2147483648
    %v1154 = vxor.u32 %v1008, 2147483648
    %v1155 = vxor.u32 %v1037, 2147483648
    %v1156 = vxor.u32 %v1066, 2147483648
    %v1157 = vxor.u32 %v1095, 2147483648
    %v1158 = vxor.u32 %v1124, 2147483648
    %v1159 = vxor.u32 %v952, 2147483648
    %v1160 = vxor.u32 %v981, 2147483648
    %v1161 = vxor.u32 %v1010, 2147483648
    %v1162 = vxor.u32 %v1039, 2147483648
    %v1163 = vxor.u32 %v1068, 2147483648
    %v1164 = vxor.u32 %v1097, 2147483648
    %v1165 = vxor.u32 %v1126, 2147483648
    %v1166 = vxor.u32 %v955, 2147483648
    %v1167 = vxor.u32 %v984, 2147483648
    %v1168 = vxor.u32 %v1013, 2147483648
    %v1169 = vxor.u32 %v1042, 2147483648
    %v1170 = vxor.u32 %v1071, 2147483648
    %v1171 = vxor.u32 %v1100, 2147483648
    %v1172 = vxor.u32 %v1129, 2147483648
    %v1173 = vxor.u32 %v957, 2147483648
    %v1174 = vxor.u32 %v986, 2147483648
    %v1175 = vxor.u32 %v1015, 2147483648
    %v1176 = vxor.u32 %v1044, 2147483648
    %v1177 = vxor.u32 %v1073, 2147483648
    %v1178 = vxor.u32 %v1102, 2147483648
    %v1179 = vxor.u32 %v1131, 2147483648
    %v1180 = vxor.u32 %v960, 2147483648
    %v1181 = vxor.u32 %v989, 2147483648
    %v1182 = vxor.u32 %v1018, 2147483648
    %v1183 = vxor.u32 %v1047, 2147483648
    %v1184 = vxor.u32 %v1076, 2147483648
    %v1185 = vxor.u32 %v1105, 2147483648
    %v1186 = vxor.u32 %v1134, 2147483648
    %v1187 = vxor.u32 %v962, 2147483648
    %v1188 = vxor.u32 %v991, 2147483648
    %v1189 = vxor.u32 %v1020, 2147483648
    %v1190 = vxor.u32 %v1049, 2147483648
    %v1191 = vxor.u32 %v1078, 2147483648
    %v1192 = vxor.u32 %v1107, 2147483648
    %v1193 = vxor.u32 %v1136, 2147483648
    %v1194 = vmul.f32 %v1138, 1.442695
    %v1195 = vpow.pop %v1194
    %v1196 = vmul.f32 %v1139, 1.442695
    %v1197 = vpow.pop %v1196
    %v1198 = vmul.f32 %v1140, 1.442695
    %v1199 = vpow.pop %v1198
    %v1200 = vmul.f32 %v1141, 1.442695
    %v1201 = vpow.pop %v1200
    %v1202 = vmul.f32 %v1142, 1.442695
    %v1203 = vpow.pop %v1202
    %v1204 = vmul.f32 %v1143, 1.442695
    %v1205 = vpow.pop %v1204
    %v1206 = vmul.f32 %v1144, 1.442695
    %v1207 = vpow.pop %v1206
    %v1208 = vmul.f32 %v1145, 1.442695
    %v1209 = vpow.pop %v1208
    %v1210 = vmul.f32 %v1146, 1.442695
    %v1211 = vpow.pop %v1210
    %v1212 = vmul.f32 %v1147, 1.442695
    %v1213 = vpow.pop %v1212
    %v1214 = vmul.f32 %v1148, 1.442695
    %v1215 = vpow.pop %v1214
    %v1216 = vmul.f32 %v1149, 1.442695
    %v1217 = vpow.pop %v1216
    %v1218 = vmul.f32 %v1150, 1.442695
    %v1219 = vpow.pop %v1218
    %v1220 = vmul.f32 %v1151, 1.442695
    %v1221 = vpow.pop %v1220
    %v1222 = vmul.f32 %v1152, 1.442695
    %v1223 = vpow.pop %v1222
    %v1224 = vmul.f32 %v1153, 1.442695
    %v1225 = vpow.pop %v1224
    %v1226 = vmul.f32 %v1154, 1.442695
    %v1227 = vpow.pop %v1226
    %v1228 = vmul.f32 %v1155, 1.442695
    %v1229 = vpow.pop %v1228
    %v1230 = vmul.f32 %v1156, 1.442695
    %v1231 = vpow.pop %v1230
    %v1232 = vmul.f32 %v1157, 1.442695
    %v1233 = vpow.pop %v1232
    %v1234 = vmul.f32 %v1158, 1.442695
    %v1235 = vpow.pop %v1234
    %v1236 = vmul.f32 %v1159, 1.442695
    %v1237 = vpow.pop %v1236
    %v1238 = vmul.f32 %v1160, 1.442695
    %v1239 = vpow.pop %v1238
    %v1240 = vmul.f32 %v1161, 1.442695
    %v1241 = vpow.pop %v1240
    %v1242 = vmul.f32 %v1162, 1.442695
    %v1243 = vpow.pop %v1242
    %v1244 = vmul.f32 %v1163, 1.442695
    %v1245 = vpow.pop %v1244
    %v1246 = vmul.f32 %v1164, 1.442695
    %v1247 = vpow.pop %v1246
    %v1248 = vmul.f32 %v1165, 1.442695
    %v1249 = vpow.pop %v1248
    %v1250 = vmul.f32 %v1166, 1.442695
    %v1251 = vpow.pop %v1250
    %v1252 = vmul.f32 %v1167, 1.442695
    %v1253 = vpow.pop %v1252
    %v1254 = vmul.f32 %v1168, 1.442695
    %v1255 = vpow.pop %v1254
    %v1256 = vmul.f32 %v1169, 1.442695
    %v1257 = vpow.pop %v1256
    %v1258 = vmul.f32 %v1170, 1.442695
    %v1259 = vpow.pop %v1258
    %v1260 = vmul.f32 %v1171, 1.442695
    %v1261 = vpow.pop %v1260
    %v1262 = vmul.f32 %v1172, 1.442695
    %v1263 = vpow.pop %v1262
    %v1264 = vmul.f32 %v1173, 1.442695
    %v1265 = vpow.pop %v1264
    %v1266 = vmul.f32 %v1174, 1.442695
    %v1267 = vpow.pop %v1266
    %v1268 = vmul.f32 %v1175, 1.442695
    %v1269 = vpow.pop %v1268
    %v1270 = vmul.f32 %v1176, 1.442695
    %v1271 = vpow.pop %v1270
    %v1272 = vmul.f32 %v1177, 1.442695
    %v1273 = vpow.pop %v1272
    %v1274 = vmul.f32 %v1178, 1.442695
    %v1275 = vpow.pop %v1274
    %v1276 = vmul.f32 %v1179, 1.442695
    %v1277 = vpow.pop %v1276
    %v1278 = vmul.f32 %v1180, 1.442695
    %v1279 = vpow.pop %v1278
    %v1280 = vmul.f32 %v1181, 1.442695
    %v1281 = vpow.pop %v1280
    %v1282 = vmul.f32 %v1182, 1.442695
    %v1283 = vpow.pop %v1282
    %v1284 = vmul.f32 %v1183, 1.442695
    %v1285 = vpow.pop %v1284
    %v1286 = vmul.f32 %v1184, 1.442695
    %v1287 = vpow.pop %v1286
    %v1288 = vmul.f32 %v1185, 1.442695
    %v1289 = vpow.pop %v1288
    %v1290 = vmul.f32 %v1186, 1.442695
    %v1291 = vpow.pop %v1290
    %v1292 = vmul.f32 %v1187, 1.442695
    %v1293 = vpow.pop %v1292
    %v1294 = vmul.f32 %v1188, 1.442695
    %v1295 = vpow.pop %v1294
    %v1296 = vmul.f32 %v1189, 1.442695
    %v1297 = vpow.pop %v1296
    %v1298 = vmul.f32 %v1190, 1.442695
    %v1299 = vpow.pop %v1298
    %v1300 = vmul.f32 %v1191, 1.442695
    %v1301 = vpow.pop %v1300
    %v1302 = vmul.f32 %v1192, 1.442695
    %v1303 = vpow.pop %v1302
    %v1304 = vmul.f32 %v1193, 1.442695
    %v1305 = vpow.pop %v1304
    %v1306 = vadd.f32 %v1195, 1.0
    %v1307 = vadd.f32 %v1197, 1.0
    %v1308 = vadd.f32 %v1199, 1.0
    %v1309 = vadd.f32 %v1201, 1.0
    %v1310 = vadd.f32 %v1203, 1.0
    %v1311 = vadd.f32 %v1205, 1.0
    %v1312 = vadd.f32 %v1207, 1.0
    %v1313 = vadd.f32 %v1209, 1.0
    %v1314 = vadd.f32 %v1211, 1.0
    %v1315 = vadd.f32 %v1213, 1.0
    %v1316 = vadd.f32 %v1215, 1.0
    %v1317 = vadd.f32 %v1217, 1.0
    %v1318 = vadd.f32 %v1219, 1.0
    %v1319 = vadd.f32 %v1221, 1.0
    %v1320 = vadd.f32 %v1223, 1.0
    %v1321 = vadd.f32 %v1225, 1.0
    %v1322 = vadd.f32 %v1227, 1.0
    %v1323 = vadd.f32 %v1229, 1.0
    %v1324 = vadd.f32 %v1231, 1.0
    %v1325 = vadd.f32 %v1233, 1.0
    %v1326 = vadd.f32 %v1235, 1.0
    %v1327 = vadd.f32 %v1237, 1.0
    %v1328 = vadd.f32 %v1239, 1.0
    %v1329 = vadd.f32 %v1241, 1.0
    %v1330 = vadd.f32 %v1243, 1.0
    %v1331 = vadd.f32 %v1245, 1.0
    %v1332 = vadd.f32 %v1247, 1.0
    %v1333 = vadd.f32 %v1249, 1.0
    %v1334 = vadd.f32 %v1251, 1.0
    %v1335 = vadd.f32 %v1253, 1.0
    %v1336 = vadd.f32 %v1255, 1.0
    %v1337 = vadd.f32 %v1257, 1.0
    %v1338 = vadd.f32 %v1259, 1.0
    %v1339 = vadd.f32 %v1261, 1.0
    %v1340 = vadd.f32 %v1263, 1.0
    %v1341 = vadd.f32 %v1265, 1.0
    %v1342 = vadd.f32 %v1267, 1.0
    %v1343 = vadd.f32 %v1269, 1.0
    %v1344 = vadd.f32 %v1271, 1.0
    %v1345 = vadd.f32 %v1273, 1.0
    %v1346 = vadd.f32 %v1275, 1.0
    %v1347 = vadd.f32 %v1277, 1.0
    %v1348 = vadd.f32 %v1279, 1.0
    %v1349 = vadd.f32 %v1281, 1.0
    %v1350 = vadd.f32 %v1283, 1.0
    %v1351 = vadd.f32 %v1285, 1.0
    %v1352 = vadd.f32 %v1287, 1.0
    %v1353 = vadd.f32 %v1289, 1.0
    %v1354 = vadd.f32 %v1291, 1.0
    %v1355 = vadd.f32 %v1293, 1.0
    %v1356 = vadd.f32 %v1295, 1.0
    %v1357 = vadd.f32 %v1297, 1.0
    %v1358 = vadd.f32 %v1299, 1.0
    %v1359 = vadd.f32 %v1301, 1.0
    %v1360 = vadd.f32 %v1303, 1.0
    %v1361 = vadd.f32 %v1305, 1.0
    %v1362 = vrcp.pop %v1306
    %v1363 = vmul.f32 %v1306, %v1362
    %v1364 = vsub.f32 1.0, %v1363
    %v1365 = vmul.f32 %v1362, %v1364
    %v1366 = vadd.f32 %v1362, %v1365
    %vm1367 = vweird.f32 %v1306
    %vm1368 = vweird.f32 %v1362
    %vm1369 = vmor %vm1367, %vm1368
    %v1370 = vsel %vm1369, %v1362, %v1366
    %v1371 = vand.u32 2147483647, %v1306
    %vm1372 = vcmp.eq.f32.partialorder %v1371, 8.507059e+37
    %v1373 = vand.u32 %v1306, 2147483648
    %v1374 = vor.u32 1.1754944e-38, %v1373
    %v1375 = vsel %vm1372, %v1374, %v1370
    %v1376 = vmul.f32 1.0, %v1375
    %v1377 = vrcp.pop %v1307
    %v1378 = vmul.f32 %v1307, %v1377
    %v1379 = vsub.f32 1.0, %v1378
    %v1380 = vmul.f32 %v1377, %v1379
    %v1381 = vadd.f32 %v1377, %v1380
    %vm1382 = vweird.f32 %v1307
    %vm1383 = vweird.f32 %v1377
    %vm1384 = vmor %vm1382, %vm1383
    %v1385 = vsel %vm1384, %v1377, %v1381
    %v1386 = vand.u32 2147483647, %v1307
    %vm1387 = vcmp.eq.f32.partialorder %v1386, 8.507059e+37
    %v1388 = vand.u32 %v1307, 2147483648
    %v1389 = vor.u32 1.1754944e-38, %v1388
    %v1390 = vsel %vm1387, %v1389, %v1385
    %v1391 = vmul.f32 1.0, %v1390
    %v1392 = vrcp.pop %v1308
    %v1393 = vmul.f32 %v1308, %v1392
    %v1394 = vsub.f32 1.0, %v1393
    %v1395 = vmul.f32 %v1392, %v1394
    %v1396 = vadd.f32 %v1392, %v1395
    %vm1397 = vweird.f32 %v1308
    %vm1398 = vweird.f32 %v1392
    %vm1399 = vmor %vm1397, %vm1398
    %v1400 = vsel %vm1399, %v1392, %v1396
    %v1401 = vand.u32 2147483647, %v1308
    %vm1402 = vcmp.eq.f32.partialorder %v1401, 8.507059e+37
    %v1403 = vand.u32 %v1308, 2147483648
    %v1404 = vor.u32 1.1754944e-38, %v1403
    %v1405 = vsel %vm1402, %v1404, %v1400
    %v1406 = vmul.f32 1.0, %v1405
    %v1407 = vrcp.pop %v1309
    %v1408 = vmul.f32 %v1309, %v1407
    %v1409 = vsub.f32 1.0, %v1408
    %v1410 = vmul.f32 %v1407, %v1409
    %v1411 = vadd.f32 %v1407, %v1410
    %vm1412 = vweird.f32 %v1309
    %vm1413 = vweird.f32 %v1407
    %vm1414 = vmor %vm1412, %vm1413
    %v1415 = vsel %vm1414, %v1407, %v1411
    %v1416 = vand.u32 2147483647, %v1309
    %vm1417 = vcmp.eq.f32.partialorder %v1416, 8.507059e+37
    %v1418 = vand.u32 %v1309, 2147483648
    %v1419 = vor.u32 1.1754944e-38, %v1418
    %v1420 = vsel %vm1417, %v1419, %v1415
    %v1421 = vmul.f32 1.0, %v1420
    %v1422 = vrcp.pop %v1310
    %v1423 = vmul.f32 %v1310, %v1422
    %v1424 = vsub.f32 1.0, %v1423
    %v1425 = vmul.f32 %v1422, %v1424
    %v1426 = vadd.f32 %v1422, %v1425
    %vm1427 = vweird.f32 %v1310
    %vm1428 = vweird.f32 %v1422
    %vm1429 = vmor %vm1427, %vm1428
    %v1430 = vsel %vm1429, %v1422, %v1426
    %v1431 = vand.u32 2147483647, %v1310
    %vm1432 = vcmp.eq.f32.partialorder %v1431, 8.507059e+37
    %v1433 = vand.u32 %v1310, 2147483648
    %v1434 = vor.u32 1.1754944e-38, %v1433
    %v1435 = vsel %vm1432, %v1434, %v1430
    %v1436 = vmul.f32 1.0, %v1435
    %v1437 = vrcp.pop %v1311
    %v1438 = vmul.f32 %v1311, %v1437
    %v1439 = vsub.f32 1.0, %v1438
    %v1440 = vmul.f32 %v1437, %v1439
    %v1441 = vadd.f32 %v1437, %v1440
    %vm1442 = vweird.f32 %v1311
    %vm1443 = vweird.f32 %v1437
    %vm1444 = vmor %vm1442, %vm1443
    %v1445 = vsel %vm1444, %v1437, %v1441
    %v1446 = vand.u32 2147483647, %v1311
    %vm1447 = vcmp.eq.f32.partialorder %v1446, 8.507059e+37
    %v1448 = vand.u32 %v1311, 2147483648
    %v1449 = vor.u32 1.1754944e-38, %v1448
    %v1450 = vsel %vm1447, %v1449, %v1445
    %v1451 = vmul.f32 1.0, %v1450
    %v1452 = vrcp.pop %v1312
    %v1453 = vmul.f32 %v1312, %v1452
    %v1454 = vsub.f32 1.0, %v1453
    %v1455 = vmul.f32 %v1452, %v1454
    %v1456 = vadd.f32 %v1452, %v1455
    %vm1457 = vweird.f32 %v1312
    %vm1458 = vweird.f32 %v1452
    %vm1459 = vmor %vm1457, %vm1458
    %v1460 = vsel %vm1459, %v1452, %v1456
    %v1461 = vand.u32 2147483647, %v1312
    %vm1462 = vcmp.eq.f32.partialorder %v1461, 8.507059e+37
    %v1463 = vand.u32 %v1312, 2147483648
    %v1464 = vor.u32 1.1754944e-38, %v1463
    %v1465 = vsel %vm1462, %v1464, %v1460
    %v1466 = vmul.f32 1.0, %v1465
    %v1467 = vrcp.pop %v1313
    %v1468 = vmul.f32 %v1313, %v1467
    %v1469 = vsub.f32 1.0, %v1468
    %v1470 = vmul.f32 %v1467, %v1469
    %v1471 = vadd.f32 %v1467, %v1470
    %vm1472 = vweird.f32 %v1313
    %vm1473 = vweird.f32 %v1467
    %vm1474 = vmor %vm1472, %vm1473
    %v1475 = vsel %vm1474, %v1467, %v1471
    %v1476 = vand.u32 2147483647, %v1313
    %vm1477 = vcmp.eq.f32.partialorder %v1476, 8.507059e+37
    %v1478 = vand.u32 %v1313, 2147483648
    %v1479 = vor.u32 1.1754944e-38, %v1478
    %v1480 = vsel %vm1477, %v1479, %v1475
    %v1481 = vmul.f32 1.0, %v1480
    %v1482 = vrcp.pop %v1314
    %v1483 = vmul.f32 %v1314, %v1482
    %v1484 = vsub.f32 1.0, %v1483
    %v1485 = vmul.f32 %v1482, %v1484
    %v1486 = vadd.f32 %v1482, %v1485
    %vm1487 = vweird.f32 %v1314
    %vm1488 = vweird.f32 %v1482
    %vm1489 = vmor %vm1487, %vm1488
    %v1490 = vsel %vm1489, %v1482, %v1486
    %v1491 = vand.u32 2147483647, %v1314
    %vm1492 = vcmp.eq.f32.partialorder %v1491, 8.507059e+37
    %v1493 = vand.u32 %v1314, 2147483648
    %v1494 = vor.u32 1.1754944e-38, %v1493
    %v1495 = vsel %vm1492, %v1494, %v1490
    %v1496 = vmul.f32 1.0, %v1495
    %v1497 = vrcp.pop %v1315
    %v1498 = vmul.f32 %v1315, %v1497
    %v1499 = vsub.f32 1.0, %v1498
    %v1500 = vmul.f32 %v1497, %v1499
    %v1501 = vadd.f32 %v1497, %v1500
    %vm1502 = vweird.f32 %v1315
    %vm1503 = vweird.f32 %v1497
    %vm1504 = vmor %vm1502, %vm1503
    %v1505 = vsel %vm1504, %v1497, %v1501
    %v1506 = vand.u32 2147483647, %v1315
    %vm1507 = vcmp.eq.f32.partialorder %v1506, 8.507059e+37
    %v1508 = vand.u32 %v1315, 2147483648
    %v1509 = vor.u32 1.1754944e-38, %v1508
    %v1510 = vsel %vm1507, %v1509, %v1505
    %v1511 = vmul.f32 1.0, %v1510
    %v1512 = vrcp.pop %v1316
    %v1513 = vmul.f32 %v1316, %v1512
    %v1514 = vsub.f32 1.0, %v1513
    %v1515 = vmul.f32 %v1512, %v1514
    %v1516 = vadd.f32 %v1512, %v1515
    %vm1517 = vweird.f32 %v1316
    %vm1518 = vweird.f32 %v1512
    %vm1519 = vmor %vm1517, %vm1518
    %v1520 = vsel %vm1519, %v1512, %v1516
    %v1521 = vand.u32 2147483647, %v1316
    %vm1522 = vcmp.eq.f32.partialorder %v1521, 8.507059e+37
    %v1523 = vand.u32 %v1316, 2147483648
    %v1524 = vor.u32 1.1754944e-38, %v1523
    %v1525 = vsel %vm1522, %v1524, %v1520
    %v1526 = vmul.f32 1.0, %v1525
    %v1527 = vrcp.pop %v1317
    %v1528 = vmul.f32 %v1317, %v1527
    %v1529 = vsub.f32 1.0, %v1528
    %v1530 = vmul.f32 %v1527, %v1529
    %v1531 = vadd.f32 %v1527, %v1530
    %vm1532 = vweird.f32 %v1317
    %vm1533 = vweird.f32 %v1527
    %vm1534 = vmor %vm1532, %vm1533
    %v1535 = vsel %vm1534, %v1527, %v1531
    %v1536 = vand.u32 2147483647, %v1317
    %vm1537 = vcmp.eq.f32.partialorder %v1536, 8.507059e+37
    %v1538 = vand.u32 %v1317, 2147483648
    %v1539 = vor.u32 1.1754944e-38, %v1538
    %v1540 = vsel %vm1537, %v1539, %v1535
    %v1541 = vmul.f32 1.0, %v1540
    %v1542 = vrcp.pop %v1318
    %v1543 = vmul.f32 %v1318, %v1542
    %v1544 = vsub.f32 1.0, %v1543
    %v1545 = vmul.f32 %v1542, %v1544
    %v1546 = vadd.f32 %v1542, %v1545
    %vm1547 = vweird.f32 %v1318
    %vm1548 = vweird.f32 %v1542
    %vm1549 = vmor %vm1547, %vm1548
    %v1550 = vsel %vm1549, %v1542, %v1546
    %v1551 = vand.u32 2147483647, %v1318
    %vm1552 = vcmp.eq.f32.partialorder %v1551, 8.507059e+37
    %v1553 = vand.u32 %v1318, 2147483648
    %v1554 = vor.u32 1.1754944e-38, %v1553
    %v1555 = vsel %vm1552, %v1554, %v1550
    %v1556 = vmul.f32 1.0, %v1555
    %v1557 = vrcp.pop %v1319
    %v1558 = vmul.f32 %v1319, %v1557
    %v1559 = vsub.f32 1.0, %v1558
    %v1560 = vmul.f32 %v1557, %v1559
    %v1561 = vadd.f32 %v1557, %v1560
    %vm1562 = vweird.f32 %v1319
    %vm1563 = vweird.f32 %v1557
    %vm1564 = vmor %vm1562, %vm1563
    %v1565 = vsel %vm1564, %v1557, %v1561
    %v1566 = vand.u32 2147483647, %v1319
    %vm1567 = vcmp.eq.f32.partialorder %v1566, 8.507059e+37
    %v1568 = vand.u32 %v1319, 2147483648
    %v1569 = vor.u32 1.1754944e-38, %v1568
    %v1570 = vsel %vm1567, %v1569, %v1565
    %v1571 = vmul.f32 1.0, %v1570
    %v1572 = vrcp.pop %v1320
    %v1573 = vmul.f32 %v1320, %v1572
    %v1574 = vsub.f32 1.0, %v1573
    %v1575 = vmul.f32 %v1572, %v1574
    %v1576 = vadd.f32 %v1572, %v1575
    %vm1577 = vweird.f32 %v1320
    %vm1578 = vweird.f32 %v1572
    %vm1579 = vmor %vm1577, %vm1578
    %v1580 = vsel %vm1579, %v1572, %v1576
    %v1581 = vand.u32 2147483647, %v1320
    %vm1582 = vcmp.eq.f32.partialorder %v1581, 8.507059e+37
    %v1583 = vand.u32 %v1320, 2147483648
    %v1584 = vor.u32 1.1754944e-38, %v1583
    %v1585 = vsel %vm1582, %v1584, %v1580
    %v1586 = vmul.f32 1.0, %v1585
    %v1587 = vrcp.pop %v1321
    %v1588 = vmul.f32 %v1321, %v1587
    %v1589 = vsub.f32 1.0, %v1588
    %v1590 = vmul.f32 %v1587, %v1589
    %v1591 = vadd.f32 %v1587, %v1590
    %vm1592 = vweird.f32 %v1321
    %vm1593 = vweird.f32 %v1587
    %vm1594 = vmor %vm1592, %vm1593
    %v1595 = vsel %vm1594, %v1587, %v1591
    %v1596 = vand.u32 2147483647, %v1321
    %vm1597 = vcmp.eq.f32.partialorder %v1596, 8.507059e+37
    %v1598 = vand.u32 %v1321, 2147483648
    %v1599 = vor.u32 1.1754944e-38, %v1598
    %v1600 = vsel %vm1597, %v1599, %v1595
    %v1601 = vmul.f32 1.0, %v1600
    %v1602 = vrcp.pop %v1322
    %v1603 = vmul.f32 %v1322, %v1602
    %v1604 = vsub.f32 1.0, %v1603
    %v1605 = vmul.f32 %v1602, %v1604
    %v1606 = vadd.f32 %v1602, %v1605
    %vm1607 = vweird.f32 %v1322
    %vm1608 = vweird.f32 %v1602
    %vm1609 = vmor %vm1607, %vm1608
    %v1610 = vsel %vm1609, %v1602, %v1606
    %v1611 = vand.u32 2147483647, %v1322
    %vm1612 = vcmp.eq.f32.partialorder %v1611, 8.507059e+37
    %v1613 = vand.u32 %v1322, 2147483648
    %v1614 = vor.u32 1.1754944e-38, %v1613
    %v1615 = vsel %vm1612, %v1614, %v1610
    %v1616 = vmul.f32 1.0, %v1615
    %v1617 = vrcp.pop %v1323
    %v1618 = vmul.f32 %v1323, %v1617
    %v1619 = vsub.f32 1.0, %v1618
    %v1620 = vmul.f32 %v1617, %v1619
    %v1621 = vadd.f32 %v1617, %v1620
    %vm1622 = vweird.f32 %v1323
    %vm1623 = vweird.f32 %v1617
    %vm1624 = vmor %vm1622, %vm1623
    %v1625 = vsel %vm1624, %v1617, %v1621
    %v1626 = vand.u32 2147483647, %v1323
    %vm1627 = vcmp.eq.f32.partialorder %v1626, 8.507059e+37
    %v1628 = vand.u32 %v1323, 2147483648
    %v1629 = vor.u32 1.1754944e-38, %v1628
    %v1630 = vsel %vm1627, %v1629, %v1625
    %v1631 = vmul.f32 1.0, %v1630
    %v1632 = vrcp.pop %v1324
    %v1633 = vmul.f32 %v1324, %v1632
    %v1634 = vsub.f32 1.0, %v1633
    %v1635 = vmul.f32 %v1632, %v1634
    %v1636 = vadd.f32 %v1632, %v1635
    %vm1637 = vweird.f32 %v1324
    %vm1638 = vweird.f32 %v1632
    %vm1639 = vmor %vm1637, %vm1638
    %v1640 = vsel %vm1639, %v1632, %v1636
    %v1641 = vand.u32 2147483647, %v1324
    %vm1642 = vcmp.eq.f32.partialorder %v1641, 8.507059e+37
    %v1643 = vand.u32 %v1324, 2147483648
    %v1644 = vor.u32 1.1754944e-38, %v1643
    %v1645 = vsel %vm1642, %v1644, %v1640
    %v1646 = vmul.f32 1.0, %v1645
    %v1647 = vrcp.pop %v1325
    %v1648 = vmul.f32 %v1325, %v1647
    %v1649 = vsub.f32 1.0, %v1648
    %v1650 = vmul.f32 %v1647, %v1649
    %v1651 = vadd.f32 %v1647, %v1650
    %vm1652 = vweird.f32 %v1325
    %vm1653 = vweird.f32 %v1647
    %vm1654 = vmor %vm1652, %vm1653
    %v1655 = vsel %vm1654, %v1647, %v1651
    %v1656 = vand.u32 2147483647, %v1325
    %vm1657 = vcmp.eq.f32.partialorder %v1656, 8.507059e+37
    %v1658 = vand.u32 %v1325, 2147483648
    %v1659 = vor.u32 1.1754944e-38, %v1658
    %v1660 = vsel %vm1657, %v1659, %v1655
    %v1661 = vmul.f32 1.0, %v1660
    %v1662 = vrcp.pop %v1326
    %v1663 = vmul.f32 %v1326, %v1662
    %v1664 = vsub.f32 1.0, %v1663
    %v1665 = vmul.f32 %v1662, %v1664
    %v1666 = vadd.f32 %v1662, %v1665
    %vm1667 = vweird.f32 %v1326
    %vm1668 = vweird.f32 %v1662
    %vm1669 = vmor %vm1667, %vm1668
    %v1670 = vsel %vm1669, %v1662, %v1666
    %v1671 = vand.u32 2147483647, %v1326
    %vm1672 = vcmp.eq.f32.partialorder %v1671, 8.507059e+37
    %v1673 = vand.u32 %v1326, 2147483648
    %v1674 = vor.u32 1.1754944e-38, %v1673
    %v1675 = vsel %vm1672, %v1674, %v1670
    %v1676 = vmul.f32 1.0, %v1675
    %v1677 = vrcp.pop %v1327
    %v1678 = vmul.f32 %v1327, %v1677
    %v1679 = vsub.f32 1.0, %v1678
    %v1680 = vmul.f32 %v1677, %v1679
    %v1681 = vadd.f32 %v1677, %v1680
    %vm1682 = vweird.f32 %v1327
    %vm1683 = vweird.f32 %v1677
    %vm1684 = vmor %vm1682, %vm1683
    %v1685 = vsel %vm1684, %v1677, %v1681
    %v1686 = vand.u32 2147483647, %v1327
    %vm1687 = vcmp.eq.f32.partialorder %v1686, 8.507059e+37
    %v1688 = vand.u32 %v1327, 2147483648
    %v1689 = vor.u32 1.1754944e-38, %v1688
    %v1690 = vsel %vm1687, %v1689, %v1685
    %v1691 = vmul.f32 1.0, %v1690
    %v1692 = vrcp.pop %v1328
    %v1693 = vmul.f32 %v1328, %v1692
    %v1694 = vsub.f32 1.0, %v1693
    %v1695 = vmul.f32 %v1692, %v1694
    %v1696 = vadd.f32 %v1692, %v1695
    %vm1697 = vweird.f32 %v1328
    %vm1698 = vweird.f32 %v1692
    %vm1699 = vmor %vm1697, %vm1698
    %v1700 = vsel %vm1699, %v1692, %v1696
    %v1701 = vand.u32 2147483647, %v1328
    %vm1702 = vcmp.eq.f32.partialorder %v1701, 8.507059e+37
    %v1703 = vand.u32 %v1328, 2147483648
    %v1704 = vor.u32 1.1754944e-38, %v1703
    %v1705 = vsel %vm1702, %v1704, %v1700
    %v1706 = vmul.f32 1.0, %v1705
    %v1707 = vrcp.pop %v1329
    %v1708 = vmul.f32 %v1329, %v1707
    %v1709 = vsub.f32 1.0, %v1708
    %v1710 = vmul.f32 %v1707, %v1709
    %v1711 = vadd.f32 %v1707, %v1710
    %vm1712 = vweird.f32 %v1329
    %vm1713 = vweird.f32 %v1707
    %vm1714 = vmor %vm1712, %vm1713
    %v1715 = vsel %vm1714, %v1707, %v1711
    %v1716 = vand.u32 2147483647, %v1329
    %vm1717 = vcmp.eq.f32.partialorder %v1716, 8.507059e+37
    %v1718 = vand.u32 %v1329, 2147483648
    %v1719 = vor.u32 1.1754944e-38, %v1718
    %v1720 = vsel %vm1717, %v1719, %v1715
    %v1721 = vmul.f32 1.0, %v1720
    %v1722 = vrcp.pop %v1330
    %v1723 = vmul.f32 %v1330, %v1722
    %v1724 = vsub.f32 1.0, %v1723
    %v1725 = vmul.f32 %v1722, %v1724
    %v1726 = vadd.f32 %v1722, %v1725
    %vm1727 = vweird.f32 %v1330
    %vm1728 = vweird.f32 %v1722
    %vm1729 = vmor %vm1727, %vm1728
    %v1730 = vsel %vm1729, %v1722, %v1726
    %v1731 = vand.u32 2147483647, %v1330
    %vm1732 = vcmp.eq.f32.partialorder %v1731, 8.507059e+37
    %v1733 = vand.u32 %v1330, 2147483648
    %v1734 = vor.u32 1.1754944e-38, %v1733
    %v1735 = vsel %vm1732, %v1734, %v1730
    %v1736 = vmul.f32 1.0, %v1735
    %v1737 = vrcp.pop %v1331
    %v1738 = vmul.f32 %v1331, %v1737
    %v1739 = vsub.f32 1.0, %v1738
    %v1740 = vmul.f32 %v1737, %v1739
    %v1741 = vadd.f32 %v1737, %v1740
    %vm1742 = vweird.f32 %v1331
    %vm1743 = vweird.f32 %v1737
    %vm1744 = vmor %vm1742, %vm1743
    %v1745 = vsel %vm1744, %v1737, %v1741
    %v1746 = vand.u32 2147483647, %v1331
    %vm1747 = vcmp.eq.f32.partialorder %v1746, 8.507059e+37
    %v1748 = vand.u32 %v1331, 2147483648
    %v1749 = vor.u32 1.1754944e-38, %v1748
    %v1750 = vsel %vm1747, %v1749, %v1745
    %v1751 = vmul.f32 1.0, %v1750
    %v1752 = vrcp.pop %v1332
    %v1753 = vmul.f32 %v1332, %v1752
    %v1754 = vsub.f32 1.0, %v1753
    %v1755 = vmul.f32 %v1752, %v1754
    %v1756 = vadd.f32 %v1752, %v1755
    %vm1757 = vweird.f32 %v1332
    %vm1758 = vweird.f32 %v1752
    %vm1759 = vmor %vm1757, %vm1758
    %v1760 = vsel %vm1759, %v1752, %v1756
    %v1761 = vand.u32 2147483647, %v1332
    %vm1762 = vcmp.eq.f32.partialorder %v1761, 8.507059e+37
    %v1763 = vand.u32 %v1332, 2147483648
    %v1764 = vor.u32 1.1754944e-38, %v1763
    %v1765 = vsel %vm1762, %v1764, %v1760
    %v1766 = vmul.f32 1.0, %v1765
    %v1767 = vrcp.pop %v1333
    %v1768 = vmul.f32 %v1333, %v1767
    %v1769 = vsub.f32 1.0, %v1768
    %v1770 = vmul.f32 %v1767, %v1769
    %v1771 = vadd.f32 %v1767, %v1770
    %vm1772 = vweird.f32 %v1333
    %vm1773 = vweird.f32 %v1767
    %vm1774 = vmor %vm1772, %vm1773
    %v1775 = vsel %vm1774, %v1767, %v1771
    %v1776 = vand.u32 2147483647, %v1333
    %vm1777 = vcmp.eq.f32.partialorder %v1776, 8.507059e+37
    %v1778 = vand.u32 %v1333, 2147483648
    %v1779 = vor.u32 1.1754944e-38, %v1778
    %v1780 = vsel %vm1777, %v1779, %v1775
    %v1781 = vmul.f32 1.0, %v1780
    %v1782 = vrcp.pop %v1334
    %v1783 = vmul.f32 %v1334, %v1782
    %v1784 = vsub.f32 1.0, %v1783
    %v1785 = vmul.f32 %v1782, %v1784
    %v1786 = vadd.f32 %v1782, %v1785
    %vm1787 = vweird.f32 %v1334
    %vm1788 = vweird.f32 %v1782
    %vm1789 = vmor %vm1787, %vm1788
    %v1790 = vsel %vm1789, %v1782, %v1786
    %v1791 = vand.u32 2147483647, %v1334
    %vm1792 = vcmp.eq.f32.partialorder %v1791, 8.507059e+37
    %v1793 = vand.u32 %v1334, 2147483648
    %v1794 = vor.u32 1.1754944e-38, %v1793
    %v1795 = vsel %vm1792, %v1794, %v1790
    %v1796 = vmul.f32 1.0, %v1795
    %v1797 = vrcp.pop %v1335
    %v1798 = vmul.f32 %v1335, %v1797
    %v1799 = vsub.f32 1.0, %v1798
    %v1800 = vmul.f32 %v1797, %v1799
    %v1801 = vadd.f32 %v1797, %v1800
    %vm1802 = vweird.f32 %v1335
    %vm1803 = vweird.f32 %v1797
    %vm1804 = vmor %vm1802, %vm1803
    %v1805 = vsel %vm1804, %v1797, %v1801
    %v1806 = vand.u32 2147483647, %v1335
    %vm1807 = vcmp.eq.f32.partialorder %v1806, 8.507059e+37
    %v1808 = vand.u32 %v1335, 2147483648
    %v1809 = vor.u32 1.1754944e-38, %v1808
    %v1810 = vsel %vm1807, %v1809, %v1805
    %v1811 = vmul.f32 1.0, %v1810
    %v1812 = vrcp.pop %v1336
    %v1813 = vmul.f32 %v1336, %v1812
    %v1814 = vsub.f32 1.0, %v1813
    %v1815 = vmul.f32 %v1812, %v1814
    %v1816 = vadd.f32 %v1812, %v1815
    %vm1817 = vweird.f32 %v1336
    %vm1818 = vweird.f32 %v1812
    %vm1819 = vmor %vm1817, %vm1818
    %v1820 = vsel %vm1819, %v1812, %v1816
    %v1821 = vand.u32 2147483647, %v1336
    %vm1822 = vcmp.eq.f32.partialorder %v1821, 8.507059e+37
    %v1823 = vand.u32 %v1336, 2147483648
    %v1824 = vor.u32 1.1754944e-38, %v1823
    %v1825 = vsel %vm1822, %v1824, %v1820
    %v1826 = vmul.f32 1.0, %v1825
    %v1827 = vrcp.pop %v1337
    %v1828 = vmul.f32 %v1337, %v1827
    %v1829 = vsub.f32 1.0, %v1828
    %v1830 = vmul.f32 %v1827, %v1829
    %v1831 = vadd.f32 %v1827, %v1830
    %vm1832 = vweird.f32 %v1337
    %vm1833 = vweird.f32 %v1827
    %vm1834 = vmor %vm1832, %vm1833
    %v1835 = vsel %vm1834, %v1827, %v1831
    %v1836 = vand.u32 2147483647, %v1337
    %vm1837 = vcmp.eq.f32.partialorder %v1836, 8.507059e+37
    %v1838 = vand.u32 %v1337, 2147483648
    %v1839 = vor.u32 1.1754944e-38, %v1838
    %v1840 = vsel %vm1837, %v1839, %v1835
    %v1841 = vmul.f32 1.0, %v1840
    %v1842 = vrcp.pop %v1338
    %v1843 = vmul.f32 %v1338, %v1842
    %v1844 = vsub.f32 1.0, %v1843
    %v1845 = vmul.f32 %v1842, %v1844
    %v1846 = vadd.f32 %v1842, %v1845
    %vm1847 = vweird.f32 %v1338
    %vm1848 = vweird.f32 %v1842
    %vm1849 = vmor %vm1847, %vm1848
    %v1850 = vsel %vm1849, %v1842, %v1846
    %v1851 = vand.u32 2147483647, %v1338
    %vm1852 = vcmp.eq.f32.partialorder %v1851, 8.507059e+37
    %v1853 = vand.u32 %v1338, 2147483648
    %v1854 = vor.u32 1.1754944e-38, %v1853
    %v1855 = vsel %vm1852, %v1854, %v1850
    %v1856 = vmul.f32 1.0, %v1855
    %v1857 = vrcp.pop %v1339
    %v1858 = vmul.f32 %v1339, %v1857
    %v1859 = vsub.f32 1.0, %v1858
    %v1860 = vmul.f32 %v1857, %v1859
    %v1861 = vadd.f32 %v1857, %v1860
    %vm1862 = vweird.f32 %v1339
    %vm1863 = vweird.f32 %v1857
    %vm1864 = vmor %vm1862, %vm1863
    %v1865 = vsel %vm1864, %v1857, %v1861
    %v1866 = vand.u32 2147483647, %v1339
    %vm1867 = vcmp.eq.f32.partialorder %v1866, 8.507059e+37
    %v1868 = vand.u32 %v1339, 2147483648
    %v1869 = vor.u32 1.1754944e-38, %v1868
    %v1870 = vsel %vm1867, %v1869, %v1865
    %v1871 = vmul.f32 1.0, %v1870
    %v1872 = vrcp.pop %v1340
    %v1873 = vmul.f32 %v1340, %v1872
    %v1874 = vsub.f32 1.0, %v1873
    %v1875 = vmul.f32 %v1872, %v1874
    %v1876 = vadd.f32 %v1872, %v1875
    %vm1877 = vweird.f32 %v1340
    %vm1878 = vweird.f32 %v1872
    %vm1879 = vmor %vm1877, %vm1878
    %v1880 = vsel %vm1879, %v1872, %v1876
    %v1881 = vand.u32 2147483647, %v1340
    %vm1882 = vcmp.eq.f32.partialorder %v1881, 8.507059e+37
    %v1883 = vand.u32 %v1340, 2147483648
    %v1884 = vor.u32 1.1754944e-38, %v1883
    %v1885 = vsel %vm1882, %v1884, %v1880
    %v1886 = vmul.f32 1.0, %v1885
    %v1887 = vrcp.pop %v1341
    %v1888 = vmul.f32 %v1341, %v1887
    %v1889 = vsub.f32 1.0, %v1888
    %v1890 = vmul.f32 %v1887, %v1889
    %v1891 = vadd.f32 %v1887, %v1890
    %vm1892 = vweird.f32 %v1341
    %vm1893 = vweird.f32 %v1887
    %vm1894 = vmor %vm1892, %vm1893
    %v1895 = vsel %vm1894, %v1887, %v1891
    %v1896 = vand.u32 2147483647, %v1341
    %vm1897 = vcmp.eq.f32.partialorder %v1896, 8.507059e+37
    %v1898 = vand.u32 %v1341, 2147483648
    %v1899 = vor.u32 1.1754944e-38, %v1898
    %v1900 = vsel %vm1897, %v1899, %v1895
    %v1901 = vmul.f32 1.0, %v1900
    %v1902 = vrcp.pop %v1342
    %v1903 = vmul.f32 %v1342, %v1902
    %v1904 = vsub.f32 1.0, %v1903
    %v1905 = vmul.f32 %v1902, %v1904
    %v1906 = vadd.f32 %v1902, %v1905
    %vm1907 = vweird.f32 %v1342
    %vm1908 = vweird.f32 %v1902
    %vm1909 = vmor %vm1907, %vm1908
    %v1910 = vsel %vm1909, %v1902, %v1906
    %v1911 = vand.u32 2147483647, %v1342
    %vm1912 = vcmp.eq.f32.partialorder %v1911, 8.507059e+37
    %v1913 = vand.u32 %v1342, 2147483648
    %v1914 = vor.u32 1.1754944e-38, %v1913
    %v1915 = vsel %vm1912, %v1914, %v1910
    %v1916 = vmul.f32 1.0, %v1915
    %v1917 = vrcp.pop %v1343
    %v1918 = vmul.f32 %v1343, %v1917
    %v1919 = vsub.f32 1.0, %v1918
    %v1920 = vmul.f32 %v1917, %v1919
    %v1921 = vadd.f32 %v1917, %v1920
    %vm1922 = vweird.f32 %v1343
    %vm1923 = vweird.f32 %v1917
    %vm1924 = vmor %vm1922, %vm1923
    %v1925 = vsel %vm1924, %v1917, %v1921
    %v1926 = vand.u32 2147483647, %v1343
    %vm1927 = vcmp.eq.f32.partialorder %v1926, 8.507059e+37
    %v1928 = vand.u32 %v1343, 2147483648
    %v1929 = vor.u32 1.1754944e-38, %v1928
    %v1930 = vsel %vm1927, %v1929, %v1925
    %v1931 = vmul.f32 1.0, %v1930
    %v1932 = vrcp.pop %v1344
    %v1933 = vmul.f32 %v1344, %v1932
    %v1934 = vsub.f32 1.0, %v1933
    %v1935 = vmul.f32 %v1932, %v1934
    %v1936 = vadd.f32 %v1932, %v1935
    %vm1937 = vweird.f32 %v1344
    %vm1938 = vweird.f32 %v1932
    %vm1939 = vmor %vm1937, %vm1938
    %v1940 = vsel %vm1939, %v1932, %v1936
    %v1941 = vand.u32 2147483647, %v1344
    %vm1942 = vcmp.eq.f32.partialorder %v1941, 8.507059e+37
    %v1943 = vand.u32 %v1344, 2147483648
    %v1944 = vor.u32 1.1754944e-38, %v1943
    %v1945 = vsel %vm1942, %v1944, %v1940
    %v1946 = vmul.f32 1.0, %v1945
    %v1947 = vrcp.pop %v1345
    %v1948 = vmul.f32 %v1345, %v1947
    %v1949 = vsub.f32 1.0, %v1948
    %v1950 = vmul.f32 %v1947, %v1949
    %v1951 = vadd.f32 %v1947, %v1950
    %vm1952 = vweird.f32 %v1345
    %vm1953 = vweird.f32 %v1947
    %vm1954 = vmor %vm1952, %vm1953
    %v1955 = vsel %vm1954, %v1947, %v1951
    %v1956 = vand.u32 2147483647, %v1345
    %vm1957 = vcmp.eq.f32.partialorder %v1956, 8.507059e+37
    %v1958 = vand.u32 %v1345, 2147483648
    %v1959 = vor.u32 1.1754944e-38, %v1958
    %v1960 = vsel %vm1957, %v1959, %v1955
    %v1961 = vmul.f32 1.0, %v1960
    %v1962 = vrcp.pop %v1346
    %v1963 = vmul.f32 %v1346, %v1962
    %v1964 = vsub.f32 1.0, %v1963
    %v1965 = vmul.f32 %v1962, %v1964
    %v1966 = vadd.f32 %v1962, %v1965
    %vm1967 = vweird.f32 %v1346
    %vm1968 = vweird.f32 %v1962
    %vm1969 = vmor %vm1967, %vm1968
    %v1970 = vsel %vm1969, %v1962, %v1966
    %v1971 = vand.u32 2147483647, %v1346
    %vm1972 = vcmp.eq.f32.partialorder %v1971, 8.507059e+37
    %v1973 = vand.u32 %v1346, 2147483648
    %v1974 = vor.u32 1.1754944e-38, %v1973
    %v1975 = vsel %vm1972, %v1974, %v1970
    %v1976 = vmul.f32 1.0, %v1975
    %v1977 = vrcp.pop %v1347
    %v1978 = vmul.f32 %v1347, %v1977
    %v1979 = vsub.f32 1.0, %v1978
    %v1980 = vmul.f32 %v1977, %v1979
    %v1981 = vadd.f32 %v1977, %v1980
    %vm1982 = vweird.f32 %v1347
    %vm1983 = vweird.f32 %v1977
    %vm1984 = vmor %vm1982, %vm1983
    %v1985 = vsel %vm1984, %v1977, %v1981
    %v1986 = vand.u32 2147483647, %v1347
    %vm1987 = vcmp.eq.f32.partialorder %v1986, 8.507059e+37
    %v1988 = vand.u32 %v1347, 2147483648
    %v1989 = vor.u32 1.1754944e-38, %v1988
    %v1990 = vsel %vm1987, %v1989, %v1985
    %v1991 = vmul.f32 1.0, %v1990
    %v1992 = vrcp.pop %v1348
    %v1993 = vmul.f32 %v1348, %v1992
    %v1994 = vsub.f32 1.0, %v1993
    %v1995 = vmul.f32 %v1992, %v1994
    %v1996 = vadd.f32 %v1992, %v1995
    %vm1997 = vweird.f32 %v1348
    %vm1998 = vweird.f32 %v1992
    %vm1999 = vmor %vm1997, %vm1998
    %v2000 = vsel %vm1999, %v1992, %v1996
    %v2001 = vand.u32 2147483647, %v1348
    %vm2002 = vcmp.eq.f32.partialorder %v2001, 8.507059e+37
    %v2003 = vand.u32 %v1348, 2147483648
    %v2004 = vor.u32 1.1754944e-38, %v2003
    %v2005 = vsel %vm2002, %v2004, %v2000
    %v2006 = vmul.f32 1.0, %v2005
    %v2007 = vrcp.pop %v1349
    %v2008 = vmul.f32 %v1349, %v2007
    %v2009 = vsub.f32 1.0, %v2008
    %v2010 = vmul.f32 %v2007, %v2009
    %v2011 = vadd.f32 %v2007, %v2010
    %vm2012 = vweird.f32 %v1349
    %vm2013 = vweird.f32 %v2007
    %vm2014 = vmor %vm2012, %vm2013
    %v2015 = vsel %vm2014, %v2007, %v2011
    %v2016 = vand.u32 2147483647, %v1349
    %vm2017 = vcmp.eq.f32.partialorder %v2016, 8.507059e+37
    %v2018 = vand.u32 %v1349, 2147483648
    %v2019 = vor.u32 1.1754944e-38, %v2018
    %v2020 = vsel %vm2017, %v2019, %v2015
    %v2021 = vmul.f32 1.0, %v2020
    %v2022 = vrcp.pop %v1350
    %v2023 = vmul.f32 %v1350, %v2022
    %v2024 = vsub.f32 1.0, %v2023
    %v2025 = vmul.f32 %v2022, %v2024
    %v2026 = vadd.f32 %v2022, %v2025
    %vm2027 = vweird.f32 %v1350
    %vm2028 = vweird.f32 %v2022
    %vm2029 = vmor %vm2027, %vm2028
    %v2030 = vsel %vm2029, %v2022, %v2026
    %v2031 = vand.u32 2147483647, %v1350
    %vm2032 = vcmp.eq.f32.partialorder %v2031, 8.507059e+37
    %v2033 = vand.u32 %v1350, 2147483648
    %v2034 = vor.u32 1.1754944e-38, %v2033
    %v2035 = vsel %vm2032, %v2034, %v2030
    %v2036 = vmul.f32 1.0, %v2035
    %v2037 = vrcp.pop %v1351
    %v2038 = vmul.f32 %v1351, %v2037
    %v2039 = vsub.f32 1.0, %v2038
    %v2040 = vmul.f32 %v2037, %v2039
    %v2041 = vadd.f32 %v2037, %v2040
    %vm2042 = vweird.f32 %v1351
    %vm2043 = vweird.f32 %v2037
    %vm2044 = vmor %vm2042, %vm2043
    %v2045 = vsel %vm2044, %v2037, %v2041
    %v2046 = vand.u32 2147483647, %v1351
    %vm2047 = vcmp.eq.f32.partialorder %v2046, 8.507059e+37
    %v2048 = vand.u32 %v1351, 2147483648
    %v2049 = vor.u32 1.1754944e-38, %v2048
    %v2050 = vsel %vm2047, %v2049, %v2045
    %v2051 = vmul.f32 1.0, %v2050
    %v2052 = vrcp.pop %v1352
    %v2053 = vmul.f32 %v1352, %v2052
    %v2054 = vsub.f32 1.0, %v2053
    %v2055 = vmul.f32 %v2052, %v2054
    %v2056 = vadd.f32 %v2052, %v2055
    %vm2057 = vweird.f32 %v1352
    %vm2058 = vweird.f32 %v2052
    %vm2059 = vmor %vm2057, %vm2058
    %v2060 = vsel %vm2059, %v2052, %v2056
    %v2061 = vand.u32 2147483647, %v1352
    %vm2062 = vcmp.eq.f32.partialorder %v2061, 8.507059e+37
    %v2063 = vand.u32 %v1352, 2147483648
    %v2064 = vor.u32 1.1754944e-38, %v2063
    %v2065 = vsel %vm2062, %v2064, %v2060
    %v2066 = vmul.f32 1.0, %v2065
    %v2067 = vrcp.pop %v1353
    %v2068 = vmul.f32 %v1353, %v2067
    %v2069 = vsub.f32 1.0, %v2068
    %v2070 = vmul.f32 %v2067, %v2069
    %v2071 = vadd.f32 %v2067, %v2070
    %vm2072 = vweird.f32 %v1353
    %vm2073 = vweird.f32 %v2067
    %vm2074 = vmor %vm2072, %vm2073
    %v2075 = vsel %vm2074, %v2067, %v2071
    %v2076 = vand.u32 2147483647, %v1353
    %vm2077 = vcmp.eq.f32.partialorder %v2076, 8.507059e+37
    %v2078 = vand.u32 %v1353, 2147483648
    %v2079 = vor.u32 1.1754944e-38, %v2078
    %v2080 = vsel %vm2077, %v2079, %v2075
    %v2081 = vmul.f32 1.0, %v2080
    %v2082 = vrcp.pop %v1354
    %v2083 = vmul.f32 %v1354, %v2082
    %v2084 = vsub.f32 1.0, %v2083
    %v2085 = vmul.f32 %v2082, %v2084
    %v2086 = vadd.f32 %v2082, %v2085
    %vm2087 = vweird.f32 %v1354
    %vm2088 = vweird.f32 %v2082
    %vm2089 = vmor %vm2087, %vm2088
    %v2090 = vsel %vm2089, %v2082, %v2086
    %v2091 = vand.u32 2147483647, %v1354
    %vm2092 = vcmp.eq.f32.partialorder %v2091, 8.507059e+37
    %v2093 = vand.u32 %v1354, 2147483648
    %v2094 = vor.u32 1.1754944e-38, %v2093
    %v2095 = vsel %vm2092, %v2094, %v2090
    %v2096 = vmul.f32 1.0, %v2095
    %v2097 = vrcp.pop %v1355
    %v2098 = vmul.f32 %v1355, %v2097
    %v2099 = vsub.f32 1.0, %v2098
    %v2100 = vmul.f32 %v2097, %v2099
    %v2101 = vadd.f32 %v2097, %v2100
    %vm2102 = vweird.f32 %v1355
    %vm2103 = vweird.f32 %v2097
    %vm2104 = vmor %vm2102, %vm2103
    %v2105 = vsel %vm2104, %v2097, %v2101
    %v2106 = vand.u32 2147483647, %v1355
    %vm2107 = vcmp.eq.f32.partialorder %v2106, 8.507059e+37
    %v2108 = vand.u32 %v1355, 2147483648
    %v2109 = vor.u32 1.1754944e-38, %v2108
    %v2110 = vsel %vm2107, %v2109, %v2105
    %v2111 = vmul.f32 1.0, %v2110
    %v2112 = vrcp.pop %v1356
    %v2113 = vmul.f32 %v1356, %v2112
    %v2114 = vsub.f32 1.0, %v2113
    %v2115 = vmul.f32 %v2112, %v2114
    %v2116 = vadd.f32 %v2112, %v2115
    %vm2117 = vweird.f32 %v1356
    %vm2118 = vweird.f32 %v2112
    %vm2119 = vmor %vm2117, %vm2118
    %v2120 = vsel %vm2119, %v2112, %v2116
    %v2121 = vand.u32 2147483647, %v1356
    %vm2122 = vcmp.eq.f32.partialorder %v2121, 8.507059e+37
    %v2123 = vand.u32 %v1356, 2147483648
    %v2124 = vor.u32 1.1754944e-38, %v2123
    %v2125 = vsel %vm2122, %v2124, %v2120
    %v2126 = vmul.f32 1.0, %v2125
    %v2127 = vrcp.pop %v1357
    %v2128 = vmul.f32 %v1357, %v2127
    %v2129 = vsub.f32 1.0, %v2128
    %v2130 = vmul.f32 %v2127, %v2129
    %v2131 = vadd.f32 %v2127, %v2130
    %vm2132 = vweird.f32 %v1357
    %vm2133 = vweird.f32 %v2127
    %vm2134 = vmor %vm2132, %vm2133
    %v2135 = vsel %vm2134, %v2127, %v2131
    %v2136 = vand.u32 2147483647, %v1357
    %vm2137 = vcmp.eq.f32.partialorder %v2136, 8.507059e+37
    %v2138 = vand.u32 %v1357, 2147483648
    %v2139 = vor.u32 1.1754944e-38, %v2138
    %v2140 = vsel %vm2137, %v2139, %v2135
    %v2141 = vmul.f32 1.0, %v2140
    %v2142 = vrcp.pop %v1358
    %v2143 = vmul.f32 %v1358, %v2142
    %v2144 = vsub.f32 1.0, %v2143
    %v2145 = vmul.f32 %v2142, %v2144
    %v2146 = vadd.f32 %v2142, %v2145
    %vm2147 = vweird.f32 %v1358
    %vm2148 = vweird.f32 %v2142
    %vm2149 = vmor %vm2147, %vm2148
    %v2150 = vsel %vm2149, %v2142, %v2146
    %v2151 = vand.u32 2147483647, %v1358
    %vm2152 = vcmp.eq.f32.partialorder %v2151, 8.507059e+37
    %v2153 = vand.u32 %v1358, 2147483648
    %v2154 = vor.u32 1.1754944e-38, %v2153
    %v2155 = vsel %vm2152, %v2154, %v2150
    %v2156 = vmul.f32 1.0, %v2155
    %v2157 = vrcp.pop %v1359
    %v2158 = vmul.f32 %v1359, %v2157
    %v2159 = vsub.f32 1.0, %v2158
    %v2160 = vmul.f32 %v2157, %v2159
    %v2161 = vadd.f32 %v2157, %v2160
    %vm2162 = vweird.f32 %v1359
    %vm2163 = vweird.f32 %v2157
    %vm2164 = vmor %vm2162, %vm2163
    %v2165 = vsel %vm2164, %v2157, %v2161
    %v2166 = vand.u32 2147483647, %v1359
    %vm2167 = vcmp.eq.f32.partialorder %v2166, 8.507059e+37
    %v2168 = vand.u32 %v1359, 2147483648
    %v2169 = vor.u32 1.1754944e-38, %v2168
    %v2170 = vsel %vm2167, %v2169, %v2165
    %v2171 = vmul.f32 1.0, %v2170
    %v2172 = vrcp.pop %v1360
    %v2173 = vmul.f32 %v1360, %v2172
    %v2174 = vsub.f32 1.0, %v2173
    %v2175 = vmul.f32 %v2172, %v2174
    %v2176 = vadd.f32 %v2172, %v2175
    %vm2177 = vweird.f32 %v1360
    %vm2178 = vweird.f32 %v2172
    %vm2179 = vmor %vm2177, %vm2178
    %v2180 = vsel %vm2179, %v2172, %v2176
    %v2181 = vand.u32 2147483647, %v1360
    %vm2182 = vcmp.eq.f32.partialorder %v2181, 8.507059e+37
    %v2183 = vand.u32 %v1360, 2147483648
    %v2184 = vor.u32 1.1754944e-38, %v2183
    %v2185 = vsel %vm2182, %v2184, %v2180
    %v2186 = vmul.f32 1.0, %v2185
    %v2187 = vrcp.pop %v1361
    %v2188 = vmul.f32 %v1361, %v2187
    %v2189 = vsub.f32 1.0, %v2188
    %v2190 = vmul.f32 %v2187, %v2189
    %v2191 = vadd.f32 %v2187, %v2190
    %vm2192 = vweird.f32 %v1361
    %vm2193 = vweird.f32 %v2187
    %vm2194 = vmor %vm2192, %vm2193
    %v2195 = vsel %vm2194, %v2187, %v2191
    %v2196 = vand.u32 2147483647, %v1361
    %vm2197 = vcmp.eq.f32.partialorder %v2196, 8.507059e+37
    %v2198 = vand.u32 %v1361, 2147483648
    %v2199 = vor.u32 1.1754944e-38, %v2198
    %v2200 = vsel %vm2197, %v2199, %v2195
    %v2201 = vmul.f32 1.0, %v2200
    %v2202 = vpack.c.bf16 %v1391, %v1376
    %v2203 = vpack.c.bf16 %v1421, %v1406
    %v2204 = vpack.c.bf16 %v1451, %v1436
    %v2205 = vpack.c.bf16 %v1466, %v1466
    %v2206 = vpack.c.bf16 %v1496, %v1481
    %v2207 = vpack.c.bf16 %v1526, %v1511
    %v2208 = vpack.c.bf16 %v1556, %v1541
    %v2209 = vpack.c.bf16 %v1571, %v1571
    %v2210 = vpack.c.bf16 %v1601, %v1586
    %v2211 = vpack.c.bf16 %v1631, %v1616
    %v2212 = vpack.c.bf16 %v1661, %v1646
    %v2213 = vpack.c.bf16 %v1676, %v1676
    %v2214 = vpack.c.bf16 %v1706, %v1691
    %v2215 = vpack.c.bf16 %v1736, %v1721
    %v2216 = vpack.c.bf16 %v1766, %v1751
    %v2217 = vpack.c.bf16 %v1781, %v1781
    %v2218 = vpack.c.bf16 %v1811, %v1796
    %v2219 = vpack.c.bf16 %v1841, %v1826
    %v2220 = vpack.c.bf16 %v1871, %v1856
    %v2221 = vpack.c.bf16 %v1886, %v1886
    %v2222 = vpack.c.bf16 %v1916, %v1901
    %v2223 = vpack.c.bf16 %v1946, %v1931
    %v2224 = vpack.c.bf16 %v1976, %v1961
    %v2225 = vpack.c.bf16 %v1991, %v1991
    %v2226 = vpack.c.bf16 %v2021, %v2006
    %v2227 = vpack.c.bf16 %v2051, %v2036
    %v2228 = vpack.c.bf16 %v2081, %v2066
    %v2229 = vpack.c.bf16 %v2096, %v2096
    %v2230 = vpack.c.bf16 %v2126, %v2111
    %v2231 = vpack.c.bf16 %v2156, %v2141
    %v2232 = vpack.c.bf16 %v2186, %v2171
    %v2233 = vpack.c.bf16 %v2201, %v2201
    %2234 = vst [vmem:[#allocation2] sm:$0xff] %v2202
    %2235 = vst [vmem:[#allocation2 + $0x8] sm:$0xff] %v2203
    %2236 = vst [vmem:[#allocation2 + $0x10] sm:$0xff] %v2204
    %vm2237 = vcmask 125952
    %2238 = vst.msk [vmem:[#allocation2 + $0x18] sm:$0xf] %vm2237, %v2205
    %2239 = vst [vmem:[#allocation2 + $0x1c] sm:$0xff] %v2206
    %2240 = vst [vmem:[#allocation2 + $0x24] sm:$0xff] %v2207
    %2241 = vst [vmem:[#allocation2 + $0x2c] sm:$0xff] %v2208
    %2242 = vst.msk [vmem:[#allocation2 + $0x34] sm:$0xf] %vm2237, %v2209
    %2243 = vst [vmem:[#allocation2 + $0x38] sm:$0xff] %v2210
    %2244 = vst [vmem:[#allocation2 + $0x40] sm:$0xff] %v2211
    %2245 = vst [vmem:[#allocation2 + $0x48] sm:$0xff] %v2212
    %2246 = vst.msk [vmem:[#allocation2 + $0x50] sm:$0xf] %vm2237, %v2213
    %2247 = vst [vmem:[#allocation2 + $0x54] sm:$0xff] %v2214
    %2248 = vst [vmem:[#allocation2 + $0x5c] sm:$0xff] %v2215
    %2249 = vst [vmem:[#allocation2 + $0x64] sm:$0xff] %v2216
    %2250 = vst.msk [vmem:[#allocation2 + $0x6c] sm:$0xf] %vm2237, %v2217
    %2251 = vst [vmem:[#allocation2 + $0x70] sm:$0xff] %v2218
    %2252 = vst [vmem:[#allocation2 + $0x78] sm:$0xff] %v2219
    %2253 = vst [vmem:[#allocation2 + $0x80] sm:$0xff] %v2220
    %2254 = vst.msk [vmem:[#allocation2 + $0x88] sm:$0xf] %vm2237, %v2221
    %2255 = vst [vmem:[#allocation2 + $0x8c] sm:$0xff] %v2222
    %2256 = vst [vmem:[#allocation2 + $0x94] sm:$0xff] %v2223
    %2257 = vst [vmem:[#allocation2 + $0x9c] sm:$0xff] %v2224
    %2258 = vst.msk [vmem:[#allocation2 + $0xa4] sm:$0xf] %vm2237, %v2225
    %2259 = vst [vmem:[#allocation2 + $0xa8] sm:$0xff] %v2226
    %2260 = vst [vmem:[#allocation2 + $0xb0] sm:$0xff] %v2227
    %2261 = vst [vmem:[#allocation2 + $0xb8] sm:$0xff] %v2228
    %2262 = vst.msk [vmem:[#allocation2 + $0xc0] sm:$0xf] %vm2237, %v2229
    %2263 = vst [vmem:[#allocation2 + $0xc4] sm:$0xff] %v2230
    %2264 = vst [vmem:[#allocation2 + $0xcc] sm:$0xff] %v2231
    %2265 = vst [vmem:[#allocation2 + $0xd4] sm:$0xff] %v2232
    %2266 = vst.msk [vmem:[#allocation2 + $0xdc] sm:$0xf] %vm2237, %v2233
    // Predicated region
    $region22: #{tpu_custom_call.1} parent=1 // pred_check
      _
    $region23: #{tpu_custom_call.1} parent=1 // pred_check_branch
      %2268 = sbr.rel (0) target = $region25
    $region24: #{tpu_custom_call.1} parent=1 // pred_region
      %2270 = vsyncadd [#allocation3], 0
      %s2271 = sshll.u32 [#allocation2], 4
      %s2272 = int_to_ptr.vmem [resolvable:$true] %s2271
      %s2273 = sshll.u32 %s5, 4
      %s2274 = int_to_ptr.hbm [resolvable:$true] %s2273
      %2279 = dma.vmem_to_hbm [thread:$0]  %s2272, 3584, %s2274, [#allocation3], 448, 448, 28
    $region25: #{tpu_custom_call.1} parent=1 // pred_fallthru
      _
    // Predicated region
    $region26: #{tpu_custom_call.1} parent=1 // pred_check
      _
    $region27: #{tpu_custom_call.1} parent=1 // pred_check_branch
      %2281 = sbr.rel (0) target = $region29
    $region28: #{tpu_custom_call.1} parent=1 // pred_region
      %2283 = dma.done [#allocation3], 3584
    $region29: #{tpu_custom_call.1} parent=1 // pred_fallthru
      _
    %2284 = vsyncpa [#allocation3], 1

</llo_original>
